<compile_context>
chip_gen: v6e
topology: v6e:2x2x1
jax: 0.10.0
libtpu: 0.0.40
codegen_flags: <defaults>
</compile_context>

<pallas_src>
import functools
import math

import jax
import jax.numpy as jnp
from jax.experimental import pallas as pl
from jax.experimental.pallas import tpu as pltpu


def _perceiver_attn_kernel(x_ref, lat_ref, g1_ref, b1_ref, g2_ref, b2_ref,
                           wlat_ref, wk_ref, wv_ref, wout_ref,
                           o_ref, attn_ref,
                           *, num_heads: int, head_dims: int, compute_dtype):
    f32 = jnp.float32
    bt, n1, D = x_ref.shape
    _, n2, _ = lat_ref.shape
    H, hd = num_heads, head_dims
    inner = H * hd

    def layer_norm(v, gamma, beta):
        mu = jnp.mean(v, axis=-1, keepdims=True)
        d = v - mu
        var = jnp.mean(d * d, axis=-1, keepdims=True)
        return d * jax.lax.rsqrt(var + 1e-5) * gamma + beta

    # f32 LayerNorm on flattened (rows, D) slabs, single cast to compute dtype.
    xn = layer_norm(x_ref[...].reshape(bt * n1, D).astype(f32),
                    g1_ref[...], b1_ref[...]).astype(compute_dtype)
    latn = layer_norm(lat_ref[...].reshape(bt * n2, D).astype(f32),
                      g2_ref[...], b2_ref[...]).astype(compute_dtype)

    # x path: separate K / V projections (no fused-slab lane slicing).  Cast
    # each result to the compute dtype immediately (frees the f32 slab).
    k_x = jnp.dot(xn, wk_ref[...], preferred_element_type=f32
                  ).astype(compute_dtype).reshape(bt, n1, inner)
    v_x = jnp.dot(xn, wv_ref[...], preferred_element_type=f32
                  ).astype(compute_dtype).reshape(bt, n1, inner)

    # latent path: one fused (D, 3*inner) matmul for q / k / v.  The q·k scale
    # (hd**-0.5) is already folded into the q columns of the weight.
    qkv_l = jnp.dot(latn, wlat_ref[...], preferred_element_type=f32)
    q3 = qkv_l[:, :inner].astype(compute_dtype).reshape(bt, n2, inner)
    k_l = qkv_l[:, inner:2 * inner].astype(compute_dtype).reshape(bt, n2, inner)
    v_l = qkv_l[:, 2 * inner:].astype(compute_dtype).reshape(bt, n2, inner)

    # Per-head attention (two-chunk exact softmax over x-keys and latent-keys,
    # order-invariant => identical to softmax over the concatenated keys).
    # Each head stores straight into a lane slice of the VMEM scratch: no
    # H-way concatenate and no H live head outputs.
    for h in range(H):
        sl = slice(h * hd, (h + 1) * hd)
        qh = q3[:, :, sl]
        s_x = jnp.einsum('bqd,bkd->bqk', qh, k_x[:, :, sl],
                         preferred_element_type=f32)           # (bt, n2, n1)
        s_l = jnp.einsum('bqd,bkd->bqk', qh, k_l[:, :, sl],
                         preferred_element_type=f32)           # (bt, n2, n2)
        m = jnp.maximum(jnp.max(s_x, axis=-1, keepdims=True),
                        jnp.max(s_l, axis=-1, keepdims=True))
        p_x = jnp.exp(s_x - m)
        p_l = jnp.exp(s_l - m)
        denom = (jnp.sum(p_x, axis=-1, keepdims=True)
                 + jnp.sum(p_l, axis=-1, keepdims=True))
        inv = pl.reciprocal(denom, approx=True)                # EUP slot
        p_x = (p_x * inv).astype(compute_dtype)
        p_l = (p_l * inv).astype(compute_dtype)
        oh = (jnp.einsum('bqk,bkd->bqd', p_x, v_x[:, :, sl],
                         preferred_element_type=f32)
              + jnp.einsum('bqk,bkd->bqd', p_l, v_l[:, :, sl],
                           preferred_element_type=f32))        # (bt, n2, hd)
        attn_ref[:, :, sl] = oh.astype(compute_dtype)

    # Single fat output projection from the scratch.
    attn = attn_ref[...].reshape(bt * n2, inner)
    out = jnp.dot(attn, wout_ref[...], preferred_element_type=f32)
    o_ref[...] = out.reshape(bt, n2, D).astype(o_ref.dtype)


def _tpu_budget():
    """(per-core VMEM bytes, #TensorCores) with a v7x-safe fallback."""
    vmem = 64 * 1024 * 1024
    cores = 1
    try:
        info = pltpu.get_tpu_info()
        vmem = int(getattr(info, "vmem_capacity_bytes", vmem))
        for attr in ("num_cores", "tensorcore_count", "num_tensorcores"):
            if hasattr(info, attr):
                cores = max(1, int(getattr(info, attr)))
                break
    except Exception:
        pass
    return vmem, cores


def _choose_block_b(b, n1, n2, D, inner, itemsize, vmem_capacity, min_grid):
    """Largest batch block that fits a VMEM budget; keep grid >= min_grid."""
    def est_bytes(bb):
        io = 2 * bb * (n1 + 2 * n2) * D * itemsize              # x/lat/out blocks (2x buf)
        weights = 2 * (3 * inner * D + 2 * inner * D + inner * D) * itemsize
        inter = (bb * n1 * 2 * inner * (itemsize + 4)            # k_x / v_x (+ f32 transient)
                 + bb * n2 * 3 * inner * (itemsize + 4)          # fused latent qkv
                 + bb * n2 * (n1 + n2) * 4 * 3                   # scores / probs (f32)
                 + bb * n2 * inner * itemsize)                   # attn scratch
        return io + weights + inter

    budget = int(0.6 * vmem_capacity)
    divisors = [d for d in range(1, b + 1) if b % d == 0]
    fitting = [d for d in divisors if est_bytes(d) <= budget] or [1]
    preferred = [d for d in fitting if b // d >= min_grid]
    return max(preferred) if preferred else max(fitting)


def perceiver_attention(x, latents, params, *, num_heads: int, head_dims: int,
                        compute_dtype=jnp.bfloat16, block_b=None, out_dtype=None):
    """Pallas-TPU forward of PerceiverAttention.

    x: (b, n1, D) image features; latents: (b, n2, D); params match the
    PyTorch module (to_q: (inner, D), to_kv: (2*inner, D), to_out: (D, inner)).
    Matmuls run in `compute_dtype` (bf16 by default) with f32 accumulation;
    LayerNorm and softmax stay in f32.
    """
    b, n1, D = x.shape
    _, n2, _ = latents.shape
    inner = num_heads * head_dims
    f32 = jnp.float32
    compute_dtype = jnp.dtype(compute_dtype)
    if out_dtype is None:
        out_dtype = x.dtype

    vmem_cap, cores = _tpu_budget()
    if block_b is None:
        block_b = _choose_block_b(b, n1, n2, D, inner, compute_dtype.itemsize,
                                  vmem_cap, min_grid=min(cores, max(b, 1)))
    assert b % block_b == 0, "block_b must divide the batch size"
    grid_b = b // block_b

    # LayerNorm params stay f32 (stats computed in f32 inside the kernel).
    g1 = params["norm1_w"].astype(f32).reshape(1, D)
    b1 = params["norm1_b"].astype(f32).reshape(1, D)
    g2 = params["norm2_w"].astype(f32).reshape(1, D)
    b2 = params["norm2_b"].astype(f32).reshape(1, D)

    # Weight prep (done once, outside the kernel):
    #  - fold the combined hd**-0.5 q·k scale into the q weight,
    #  - fuse [q|k|v] for the latent path into (D, 3*inner),
    #  - keep separate (D, inner) k / v weights for the x path,
    #  - pre-transpose everything so the kernel never does `.T`.
    scale = 1.0 / math.sqrt(head_dims)
    wq_t = params["to_q"].T.astype(f32) * scale               # (D, inner)
    wk_t = params["to_kv"][:inner].T.astype(f32)              # (D, inner)
    wv_t = params["to_kv"][inner:].T.astype(f32)              # (D, inner)
    w_lat = jnp.concatenate([wq_t, wk_t, wv_t], axis=1).astype(compute_dtype)
    wk_c = wk_t.astype(compute_dtype)
    wv_c = wv_t.astype(compute_dtype)
    wout_t = params["to_out"].T.astype(compute_dtype)          # (inner, D)

    x_c = x.astype(compute_dtype)
    lat_c = latents.astype(compute_dtype)

    kernel = functools.partial(_perceiver_attn_kernel, num_heads=num_heads,
                               head_dims=head_dims, compute_dtype=compute_dtype)

    def const(shape):
        return pl.BlockSpec(shape, lambda i: (0,) * len(shape))

    isz = compute_dtype.itemsize
    osz = jnp.dtype(out_dtype).itemsize
    L = n1 + n2
    flops = 2 * b * (n1 * D * 2 * inner            # k/v projections on x
                     + n2 * D * 3 * inner          # fused q/k/v on latents
                     + 2 * n2 * L * inner          # qk^T + pv, all heads
                     + n2 * inner * D)             # output projection
    cost = pl.CostEstimate(
        flops=int(flops),
        transcendentals=int(b * num_heads * n2 * L),
        bytes_accessed=int(b * (n1 + n2) * D * isz            # x + latents
                           + b * n2 * D * osz                 # output writeback
                           + (3 * inner * D + 2 * inner * D + inner * D) * isz
                           + 4 * D * 4))                      # LN params

    vmem_limit = min(int(0.85 * vmem_cap), 128 * 1024 * 1024)

    return pl.pallas_call(
        kernel,
        out_shape=jax.ShapeDtypeStruct((b, n2, D), out_dtype),
        grid_spec=pltpu.PrefetchScalarGridSpec(
            num_scalar_prefetch=0,
            grid=(grid_b,),
            in_specs=[
                pl.BlockSpec((block_b, n1, D), lambda i: (i, 0, 0)),   # x
                pl.BlockSpec((block_b, n2, D), lambda i: (i, 0, 0)),   # latents
                const((1, D)), const((1, D)),                          # norm1 w/b
                const((1, D)), const((1, D)),                          # norm2 w/b
                const((D, 3 * inner)),                                 # fused latent qkv
                const((D, inner)), const((D, inner)),                  # wk, wv (x path)
                const((inner, D)),                                     # to_out^T
            ],
            out_specs=pl.BlockSpec((block_b, n2, D), lambda i: (i, 0, 0)),
            scratch_shapes=[pltpu.VMEM((block_b, n2, inner), compute_dtype)],
        ),
        compiler_params=pltpu.CompilerParams(
            dimension_semantics=("parallel",),
            vmem_limit_bytes=vmem_limit),
        cost_estimate=cost,
    )(x_c, lat_c, g1, b1, g2, b2, w_lat, wk_c, wv_c, wout_t)


def perceiver_attention_ref(x, latents, params, *, num_heads, head_dims):
    """Pure-JAX (f32) reference mirroring the PyTorch forward."""
    inner = num_heads * head_dims

    def ln(v, g, b):
        mu = jnp.mean(v, axis=-1, keepdims=True)
        var = jnp.mean((v - mu) ** 2, axis=-1, keepdims=True)
        return (v - mu) / jnp.sqrt(var + 1e-5) * g + b

    xn = ln(x, params["norm1_w"], params["norm1_b"])
    latn = ln(latents, params["norm2_w"], params["norm2_b"])
    bsz, l, _ = latn.shape
    q = latn @ params["to_q"].T
    kv_in = jnp.concatenate([xn, latn], axis=1)
    kv = kv_in @ params["to_kv"].T
    k, v = kv[..., :inner], kv[..., inner:]

    def split_heads(t):
        bs, L, _ = t.shape
        return t.reshape(bs, L, num_heads, head_dims).transpose(0, 2, 1, 3)

    q, k, v = split_heads(q), split_heads(k), split_heads(v)
    scale = 1.0 / math.sqrt(math.sqrt(head_dims))
    w = (q * scale) @ jnp.swapaxes(k * scale, -2, -1)
    w = jax.nn.softmax(w.astype(jnp.float32), axis=-1).astype(w.dtype)
    out = w @ v
    out = out.transpose(0, 2, 1, 3).reshape(bsz, l, inner)
    return out @ params["to_out"].T


if __name__ == "__main__":
    # Small shapes consistent with the module.
    B, N1, N2 = 2, 16, 8
    EMBED_DIMS, HEAD_DIMS, NUM_HEADS = 32, 8, 4
    INNER = HEAD_DIMS * NUM_HEADS

    key = jax.random.PRNGKey(0)
    ks = jax.random.split(key, 9)
    x = jax.random.normal(ks[0], (B, N1, EMBED_DIMS), dtype=jnp.float32)
    latents = jax.random.normal(ks[1], (B, N2, EMBED_DIMS), dtype=jnp.float32)

    params = {
        "norm1_w": 1.0 + 0.1 * jax.random.normal(ks[2], (EMBED_DIMS,), jnp.float32),
        "norm1_b": 0.1 * jax.random.normal(ks[3], (EMBED_DIMS,), jnp.float32),
        "norm2_w": 1.0 + 0.1 * jax.random.normal(ks[4], (EMBED_DIMS,), jnp.float32),
        "norm2_b": 0.1 * jax.random.normal(ks[5], (EMBED_DIMS,), jnp.float32),
        "to_q": 0.05 * jax.random.normal(ks[6], (INNER, EMBED_DIMS), jnp.float32),
        "to_kv": 0.05 * jax.random.normal(ks[7], (2 * INNER, EMBED_DIMS), jnp.float32),
        "to_out": 0.05 * jax.random.normal(ks[8], (EMBED_DIMS, INNER), jnp.float32),
    }

    out = perceiver_attention(x, latents, params,
                              num_heads=NUM_HEADS, head_dims=HEAD_DIMS)
    out = jax.block_until_ready(out)

    ref = perceiver_attention_ref(x, latents, params,
                                  num_heads=NUM_HEADS, head_dims=HEAD_DIMS)
    assert out.shape == (B, N2, EMBED_DIMS)
    err = jnp.max(jnp.abs(out.astype(jnp.float32) - ref))
    # bf16 matmuls + approx reciprocal => loosened tolerance vs the f32 reference.
    assert jnp.allclose(out.astype(jnp.float32), ref, atol=2e-2, rtol=2e-2), \
        f"max abs err {err}"

    print("KERNEL_OK")
</pallas_src>

<mosaic_0001>
module attributes {stable_mosaic.version = 11 : i64} {
  func.func @_perceiver_attn_kernel(%arg0: i32, %arg1: memref<2x16x32xbf16, #tpu.memory_space<vmem>>, %arg2: memref<2x8x32xbf16, #tpu.memory_space<vmem>>, %arg3: memref<1x32xf32, #tpu.memory_space<vmem>>, %arg4: memref<1x32xf32, #tpu.memory_space<vmem>>, %arg5: memref<1x32xf32, #tpu.memory_space<vmem>>, %arg6: memref<1x32xf32, #tpu.memory_space<vmem>>, %arg7: memref<32x96xbf16, #tpu.memory_space<vmem>>, %arg8: memref<32x32xbf16, #tpu.memory_space<vmem>>, %arg9: memref<32x32xbf16, #tpu.memory_space<vmem>>, %arg10: memref<32x32xbf16, #tpu.memory_space<vmem>>, %arg11: memref<2x8x32xf32, #tpu.memory_space<vmem>>, %arg12: memref<2x8x32xbf16, #tpu.memory_space<vmem>>) attributes {dimension_semantics = [#tpu.dimension_semantics<parallel>], iteration_bounds = array<i64: 1>, scalar_prefetch = 0 : i64, scratch_operands = 1 : i64, tpu.core_type = #tpu.core_type<tc>, window_params = [{transform_indices = @transform_0, window_bounds = array<i64: 2, 16, 32>}, {transform_indices = @transform_1, window_bounds = array<i64: 2, 8, 32>}, {pipeline_mode = #tpu.pipeline_mode<synchronous>, transform_indices = @transform_2, window_bounds = array<i64: 1, 32>}, {pipeline_mode = #tpu.pipeline_mode<synchronous>, transform_indices = @transform_3, window_bounds = array<i64: 1, 32>}, {pipeline_mode = #tpu.pipeline_mode<synchronous>, transform_indices = @transform_4, window_bounds = array<i64: 1, 32>}, {pipeline_mode = #tpu.pipeline_mode<synchronous>, transform_indices = @transform_5, window_bounds = array<i64: 1, 32>}, {pipeline_mode = #tpu.pipeline_mode<synchronous>, transform_indices = @transform_6, window_bounds = array<i64: 32, 96>}, {pipeline_mode = #tpu.pipeline_mode<synchronous>, transform_indices = @transform_7, window_bounds = array<i64: 32, 32>}, {pipeline_mode = #tpu.pipeline_mode<synchronous>, transform_indices = @transform_8, window_bounds = array<i64: 32, 32>}, {pipeline_mode = #tpu.pipeline_mode<synchronous>, transform_indices = @transform_9, window_bounds = array<i64: 32, 32>}, {transform_indices = @transform_10, window_bounds = array<i64: 2, 8, 32>}]} {
    %c0 = arith.constant 0 : index
    %c0_0 = arith.constant 0 : index
    %c0_1 = arith.constant 0 : index
    %0 = vector.load %arg1[%c0, %c0_0, %c0_1] : memref<2x16x32xbf16, #tpu.memory_space<vmem>>, vector<2x16x32xbf16>
    %1 = vector.shape_cast %0 : vector<2x16x32xbf16> to vector<32x32xbf16>
    %2 = arith.extf %1 : vector<32x32xbf16> to vector<32x32xf32>
    %c0_2 = arith.constant 0 : index
    %c0_3 = arith.constant 0 : index
    %3 = vector.load %arg3[%c0_2, %c0_3] : memref<1x32xf32, #tpu.memory_space<vmem>>, vector<1x32xf32>
    %c0_4 = arith.constant 0 : index
    %c0_5 = arith.constant 0 : index
    %4 = vector.load %arg4[%c0_4, %c0_5] : memref<1x32xf32, #tpu.memory_space<vmem>>, vector<1x32xf32>
    %cst = arith.constant dense<0.000000e+00> : vector<32xf32>
    %5 = vector.multi_reduction <add>, %2, %cst [1] : vector<32x32xf32> to vector<32xf32>
    %6 = vector.shape_cast %5 : vector<32xf32> to vector<32x1xf32>
    %cst_6 = arith.constant 3.200000e+01 : f32
    %7 = vector.broadcast %cst_6 : f32 to vector<32x1xf32>
    %8 = arith.divf %6, %7 : vector<32x1xf32>
    %9 = vector.broadcast %8 : vector<32x1xf32> to vector<32x32xf32>
    %10 = arith.subf %2, %9 : vector<32x32xf32>
    %11 = arith.mulf %10, %10 : vector<32x32xf32>
    %cst_7 = arith.constant dense<0.000000e+00> : vector<32xf32>
    %12 = vector.multi_reduction <add>, %11, %cst_7 [1] : vector<32x32xf32> to vector<32xf32>
    %13 = vector.shape_cast %12 : vector<32xf32> to vector<32x1xf32>
    %cst_8 = arith.constant 3.200000e+01 : f32
    %14 = vector.broadcast %cst_8 : f32 to vector<32x1xf32>
    %15 = arith.divf %13, %14 : vector<32x1xf32>
    %cst_9 = arith.constant 9.99999974E-6 : f32
    %16 = vector.broadcast %cst_9 : f32 to vector<32x1xf32>
    %17 = arith.addf %15, %16 : vector<32x1xf32>
    %18 = math.rsqrt %17 : vector<32x1xf32>
    %19 = vector.broadcast %18 : vector<32x1xf32> to vector<32x32xf32>
    %20 = arith.mulf %10, %19 : vector<32x32xf32>
    %21 = vector.broadcast %3 : vector<1x32xf32> to vector<32x32xf32>
    %22 = arith.mulf %20, %21 : vector<32x32xf32>
    %23 = vector.broadcast %4 : vector<1x32xf32> to vector<32x32xf32>
    %24 = arith.addf %22, %23 : vector<32x32xf32>
    %25 = arith.truncf %24 : vector<32x32xf32> to vector<32x32xbf16>
    %c0_10 = arith.constant 0 : index
    %c0_11 = arith.constant 0 : index
    %c0_12 = arith.constant 0 : index
    %26 = vector.load %arg2[%c0_10, %c0_11, %c0_12] : memref<2x8x32xbf16, #tpu.memory_space<vmem>>, vector<2x8x32xbf16>
    %27 = vector.shape_cast %26 : vector<2x8x32xbf16> to vector<16x32xbf16>
    %28 = arith.extf %27 : vector<16x32xbf16> to vector<16x32xf32>
    %c0_13 = arith.constant 0 : index
    %c0_14 = arith.constant 0 : index
    %29 = vector.load %arg5[%c0_13, %c0_14] : memref<1x32xf32, #tpu.memory_space<vmem>>, vector<1x32xf32>
    %c0_15 = arith.constant 0 : index
    %c0_16 = arith.constant 0 : index
    %30 = vector.load %arg6[%c0_15, %c0_16] : memref<1x32xf32, #tpu.memory_space<vmem>>, vector<1x32xf32>
    %cst_17 = arith.constant dense<0.000000e+00> : vector<16xf32>
    %31 = vector.multi_reduction <add>, %28, %cst_17 [1] : vector<16x32xf32> to vector<16xf32>
    %32 = vector.shape_cast %31 : vector<16xf32> to vector<16x1xf32>
    %cst_18 = arith.constant 3.200000e+01 : f32
    %33 = vector.broadcast %cst_18 : f32 to vector<16x1xf32>
    %34 = arith.divf %32, %33 : vector<16x1xf32>
    %35 = vector.broadcast %34 : vector<16x1xf32> to vector<16x32xf32>
    %36 = arith.subf %28, %35 : vector<16x32xf32>
    %37 = arith.mulf %36, %36 : vector<16x32xf32>
    %cst_19 = arith.constant dense<0.000000e+00> : vector<16xf32>
    %38 = vector.multi_reduction <add>, %37, %cst_19 [1] : vector<16x32xf32> to vector<16xf32>
    %39 = vector.shape_cast %38 : vector<16xf32> to vector<16x1xf32>
    %cst_20 = arith.constant 3.200000e+01 : f32
    %40 = vector.broadcast %cst_20 : f32 to vector<16x1xf32>
    %41 = arith.divf %39, %40 : vector<16x1xf32>
    %cst_21 = arith.constant 9.99999974E-6 : f32
    %42 = vector.broadcast %cst_21 : f32 to vector<16x1xf32>
    %43 = arith.addf %41, %42 : vector<16x1xf32>
    %44 = math.rsqrt %43 : vector<16x1xf32>
    %45 = vector.broadcast %44 : vector<16x1xf32> to vector<16x32xf32>
    %46 = arith.mulf %36, %45 : vector<16x32xf32>
    %47 = vector.broadcast %29 : vector<1x32xf32> to vector<16x32xf32>
    %48 = arith.mulf %46, %47 : vector<16x32xf32>
    %49 = vector.broadcast %30 : vector<1x32xf32> to vector<16x32xf32>
    %50 = arith.addf %48, %49 : vector<16x32xf32>
    %51 = arith.truncf %50 : vector<16x32xf32> to vector<16x32xbf16>
    %c0_22 = arith.constant 0 : index
    %c0_23 = arith.constant 0 : index
    %52 = vector.load %arg8[%c0_22, %c0_23] : memref<32x32xbf16, #tpu.memory_space<vmem>>, vector<32x32xbf16>
    %cst_24 = arith.constant dense<0.000000e+00> : vector<32x32xf32>
    %53 = tpu.matmul %25, %52, %cst_24 {dimension_numbers = #tpu.dot_dimension_numbers<[1], [0], [0], [1], [0, 0, 1, 1], [], []>} : vector<32x32xbf16>, vector<32x32xbf16>, vector<32x32xf32> -> vector<32x32xf32>
    %54 = arith.truncf %53 : vector<32x32xf32> to vector<32x32xbf16>
    %55 = vector.shape_cast %54 : vector<32x32xbf16> to vector<2x16x32xbf16>
    %c0_25 = arith.constant 0 : index
    %c0_26 = arith.constant 0 : index
    %56 = vector.load %arg9[%c0_25, %c0_26] : memref<32x32xbf16, #tpu.memory_space<vmem>>, vector<32x32xbf16>
    %cst_27 = arith.constant dense<0.000000e+00> : vector<32x32xf32>
    %57 = tpu.matmul %25, %56, %cst_27 {dimension_numbers = #tpu.dot_dimension_numbers<[1], [0], [0], [1], [0, 0, 1, 1], [], []>} : vector<32x32xbf16>, vector<32x32xbf16>, vector<32x32xf32> -> vector<32x32xf32>
    %58 = arith.truncf %57 : vector<32x32xf32> to vector<32x32xbf16>
    %59 = vector.shape_cast %58 : vector<32x32xbf16> to vector<2x16x32xbf16>
    %c0_28 = arith.constant 0 : index
    %c0_29 = arith.constant 0 : index
    %60 = vector.load %arg7[%c0_28, %c0_29] : memref<32x96xbf16, #tpu.memory_space<vmem>>, vector<32x96xbf16>
    %cst_30 = arith.constant dense<0.000000e+00> : vector<16x96xf32>
    %61 = tpu.matmul %51, %60, %cst_30 {dimension_numbers = #tpu.dot_dimension_numbers<[1], [0], [0], [1], [0, 0, 1, 1], [], []>} : vector<16x32xbf16>, vector<32x96xbf16>, vector<16x96xf32> -> vector<16x96xf32>
    %62 = vector.extract_strided_slice %61 {offsets = [0, 0], sizes = [16, 32], strides = [1, 1]} : vector<16x96xf32> to vector<16x32xf32>
    %63 = arith.truncf %62 : vector<16x32xf32> to vector<16x32xbf16>
    %64 = vector.shape_cast %63 : vector<16x32xbf16> to vector<2x8x32xbf16>
    %65 = vector.extract_strided_slice %61 {offsets = [0, 32], sizes = [16, 32], strides = [1, 1]} : vector<16x96xf32> to vector<16x32xf32>
    %66 = arith.truncf %65 : vector<16x32xf32> to vector<16x32xbf16>
    %67 = vector.shape_cast %66 : vector<16x32xbf16> to vector<2x8x32xbf16>
    %68 = vector.extract_strided_slice %61 {offsets = [0, 64], sizes = [16, 32], strides = [1, 1]} : vector<16x96xf32> to vector<16x32xf32>
    %69 = arith.truncf %68 : vector<16x32xf32> to vector<16x32xbf16>
    %70 = vector.shape_cast %69 : vector<16x32xbf16> to vector<2x8x32xbf16>
    %71 = vector.extract_strided_slice %64 {offsets = [0, 0, 0], sizes = [2, 8, 8], strides = [1, 1, 1]} : vector<2x8x32xbf16> to vector<2x8x8xbf16>
    %72 = vector.extract_strided_slice %55 {offsets = [0, 0, 0], sizes = [2, 16, 8], strides = [1, 1, 1]} : vector<2x16x32xbf16> to vector<2x16x8xbf16>
    "tpu.trace_start"() <{level = 10 : i32, message = "bqd,bkd->bqk"}> : () -> ()
    %cst_31 = arith.constant dense<0.000000e+00> : vector<2x8x16xf32>
    %73 = tpu.matmul %71, %72, %cst_31 {dimension_numbers = #tpu.dot_dimension_numbers<[2], [2], [1], [1], [0, 0, 0, 1, 1, 1], [0], [0]>} : vector<2x8x8xbf16>, vector<2x16x8xbf16>, vector<2x8x16xf32> -> vector<2x8x16xf32>
    "tpu.trace_stop"() : () -> ()
    %74 = vector.extract_strided_slice %67 {offsets = [0, 0, 0], sizes = [2, 8, 8], strides = [1, 1, 1]} : vector<2x8x32xbf16> to vector<2x8x8xbf16>
    "tpu.trace_start"() <{level = 10 : i32, message = "bqd,bkd->bqk"}> : () -> ()
    %cst_32 = arith.constant dense<0.000000e+00> : vector<2x8x8xf32>
    %75 = tpu.matmul %71, %74, %cst_32 {dimension_numbers = #tpu.dot_dimension_numbers<[2], [2], [1], [1], [0, 0, 0, 1, 1, 1], [0], [0]>} : vector<2x8x8xbf16>, vector<2x8x8xbf16>, vector<2x8x8xf32> -> vector<2x8x8xf32>
    "tpu.trace_stop"() : () -> ()
    %cst_33 = arith.constant dense<0xFF800000> : vector<2x8xf32>
    %76 = vector.multi_reduction <maximumf>, %73, %cst_33 [2] : vector<2x8x16xf32> to vector<2x8xf32>
    %77 = vector.shape_cast %76 : vector<2x8xf32> to vector<2x8x1xf32>
    %cst_34 = arith.constant dense<0xFF800000> : vector<2x8xf32>
    %78 = vector.multi_reduction <maximumf>, %75, %cst_34 [2] : vector<2x8x8xf32> to vector<2x8xf32>
    %79 = vector.shape_cast %78 : vector<2x8xf32> to vector<2x8x1xf32>
    %80 = arith.maximumf %77, %79 : vector<2x8x1xf32>
    %81 = vector.broadcast %80 : vector<2x8x1xf32> to vector<2x8x16xf32>
    %82 = arith.subf %73, %81 : vector<2x8x16xf32>
    %83 = math.exp %82 : vector<2x8x16xf32>
    %84 = vector.broadcast %80 : vector<2x8x1xf32> to vector<2x8x8xf32>
    %85 = arith.subf %75, %84 : vector<2x8x8xf32>
    %86 = math.exp %85 : vector<2x8x8xf32>
    %cst_35 = arith.constant dense<0.000000e+00> : vector<2x8xf32>
    %87 = vector.multi_reduction <add>, %83, %cst_35 [2] : vector<2x8x16xf32> to vector<2x8xf32>
    %88 = vector.shape_cast %87 : vector<2x8xf32> to vector<2x8x1xf32>
    %cst_36 = arith.constant dense<0.000000e+00> : vector<2x8xf32>
    %89 = vector.multi_reduction <add>, %86, %cst_36 [2] : vector<2x8x8xf32> to vector<2x8xf32>
    %90 = vector.shape_cast %89 : vector<2x8xf32> to vector<2x8x1xf32>
    %91 = arith.addf %88, %90 : vector<2x8x1xf32>
    %92 = tpu.reciprocal %91 {approx = true} : vector<2x8x1xf32> -> vector<2x8x1xf32>
    %93 = vector.broadcast %92 : vector<2x8x1xf32> to vector<2x8x16xf32>
    %94 = arith.mulf %83, %93 : vector<2x8x16xf32>
    %95 = arith.truncf %94 : vector<2x8x16xf32> to vector<2x8x16xbf16>
    %96 = vector.broadcast %92 : vector<2x8x1xf32> to vector<2x8x8xf32>
    %97 = arith.mulf %86, %96 : vector<2x8x8xf32>
    %98 = arith.truncf %97 : vector<2x8x8xf32> to vector<2x8x8xbf16>
    %99 = vector.extract_strided_slice %59 {offsets = [0, 0, 0], sizes = [2, 16, 8], strides = [1, 1, 1]} : vector<2x16x32xbf16> to vector<2x16x8xbf16>
    "tpu.trace_start"() <{level = 10 : i32, message = "bqk,bkd->bqd"}> : () -> ()
    %cst_37 = arith.constant dense<0.000000e+00> : vector<2x8x8xf32>
    %100 = tpu.matmul %95, %99, %cst_37 {dimension_numbers = #tpu.dot_dimension_numbers<[2], [1], [1], [2], [0, 0, 0, 1, 1, 2], [0], [0]>} : vector<2x8x16xbf16>, vector<2x16x8xbf16>, vector<2x8x8xf32> -> vector<2x8x8xf32>
    "tpu.trace_stop"() : () -> ()
    %101 = vector.extract_strided_slice %70 {offsets = [0, 0, 0], sizes = [2, 8, 8], strides = [1, 1, 1]} : vector<2x8x32xbf16> to vector<2x8x8xbf16>
    "tpu.trace_start"() <{level = 10 : i32, message = "bqk,bkd->bqd"}> : () -> ()
    %cst_38 = arith.constant dense<0.000000e+00> : vector<2x8x8xf32>
    %102 = tpu.matmul %98, %101, %cst_38 {dimension_numbers = #tpu.dot_dimension_numbers<[2], [1], [1], [2], [0, 0, 0, 1, 1, 2], [0], [0]>} : vector<2x8x8xbf16>, vector<2x8x8xbf16>, vector<2x8x8xf32> -> vector<2x8x8xf32>
    "tpu.trace_stop"() : () -> ()
    %103 = arith.addf %100, %102 : vector<2x8x8xf32>
    %104 = arith.truncf %103 : vector<2x8x8xf32> to vector<2x8x8xbf16>
    %c0_39 = arith.constant 0 : index
    %c0_40 = arith.constant 0 : index
    %c0_41 = arith.constant 0 : index
    %105 = vector.load %arg12[%c0_39, %c0_40, %c0_41] : memref<2x8x32xbf16, #tpu.memory_space<vmem>>, vector<2x8x8xbf16>
    tpu.vector_store %arg12[%c0_39, %c0_40, %c0_41], %104 {strides = array<i32>} : memref<2x8x32xbf16, #tpu.memory_space<vmem>>, vector<2x8x8xbf16>,
    %106 = vector.extract_strided_slice %64 {offsets = [0, 0, 8], sizes = [2, 8, 8], strides = [1, 1, 1]} : vector<2x8x32xbf16> to vector<2x8x8xbf16>
    %107 = vector.extract_strided_slice %55 {offsets = [0, 0, 8], sizes = [2, 16, 8], strides = [1, 1, 1]} : vector<2x16x32xbf16> to vector<2x16x8xbf16>
    "tpu.trace_start"() <{level = 10 : i32, message = "bqd,bkd->bqk"}> : () -> ()
    %cst_42 = arith.constant dense<0.000000e+00> : vector<2x8x16xf32>
    %108 = tpu.matmul %106, %107, %cst_42 {dimension_numbers = #tpu.dot_dimension_numbers<[2], [2], [1], [1], [0, 0, 0, 1, 1, 1], [0], [0]>} : vector<2x8x8xbf16>, vector<2x16x8xbf16>, vector<2x8x16xf32> -> vector<2x8x16xf32>
    "tpu.trace_stop"() : () -> ()
    %109 = vector.extract_strided_slice %67 {offsets = [0, 0, 8], sizes = [2, 8, 8], strides = [1, 1, 1]} : vector<2x8x32xbf16> to vector<2x8x8xbf16>
    "tpu.trace_start"() <{level = 10 : i32, message = "bqd,bkd->bqk"}> : () -> ()
    %cst_43 = arith.constant dense<0.000000e+00> : vector<2x8x8xf32>
    %110 = tpu.matmul %106, %109, %cst_43 {dimension_numbers = #tpu.dot_dimension_numbers<[2], [2], [1], [1], [0, 0, 0, 1, 1, 1], [0], [0]>} : vector<2x8x8xbf16>, vector<2x8x8xbf16>, vector<2x8x8xf32> -> vector<2x8x8xf32>
    "tpu.trace_stop"() : () -> ()
    %cst_44 = arith.constant dense<0xFF800000> : vector<2x8xf32>
    %111 = vector.multi_reduction <maximumf>, %108, %cst_44 [2] : vector<2x8x16xf32> to vector<2x8xf32>
    %112 = vector.shape_cast %111 : vector<2x8xf32> to vector<2x8x1xf32>
    %cst_45 = arith.constant dense<0xFF800000> : vector<2x8xf32>
    %113 = vector.multi_reduction <maximumf>, %110, %cst_45 [2] : vector<2x8x8xf32> to vector<2x8xf32>
    %114 = vector.shape_cast %113 : vector<2x8xf32> to vector<2x8x1xf32>
    %115 = arith.maximumf %112, %114 : vector<2x8x1xf32>
    %116 = vector.broadcast %115 : vector<2x8x1xf32> to vector<2x8x16xf32>
    %117 = arith.subf %108, %116 : vector<2x8x16xf32>
    %118 = math.exp %117 : vector<2x8x16xf32>
    %119 = vector.broadcast %115 : vector<2x8x1xf32> to vector<2x8x8xf32>
    %120 = arith.subf %110, %119 : vector<2x8x8xf32>
    %121 = math.exp %120 : vector<2x8x8xf32>
    %cst_46 = arith.constant dense<0.000000e+00> : vector<2x8xf32>
    %122 = vector.multi_reduction <add>, %118, %cst_46 [2] : vector<2x8x16xf32> to vector<2x8xf32>
    %123 = vector.shape_cast %122 : vector<2x8xf32> to vector<2x8x1xf32>
    %cst_47 = arith.constant dense<0.000000e+00> : vector<2x8xf32>
    %124 = vector.multi_reduction <add>, %121, %cst_47 [2] : vector<2x8x8xf32> to vector<2x8xf32>
    %125 = vector.shape_cast %124 : vector<2x8xf32> to vector<2x8x1xf32>
    %126 = arith.addf %123, %125 : vector<2x8x1xf32>
    %127 = tpu.reciprocal %126 {approx = true} : vector<2x8x1xf32> -> vector<2x8x1xf32>
    %128 = vector.broadcast %127 : vector<2x8x1xf32> to vector<2x8x16xf32>
    %129 = arith.mulf %118, %128 : vector<2x8x16xf32>
    %130 = arith.truncf %129 : vector<2x8x16xf32> to vector<2x8x16xbf16>
    %131 = vector.broadcast %127 : vector<2x8x1xf32> to vector<2x8x8xf32>
    %132 = arith.mulf %121, %131 : vector<2x8x8xf32>
    %133 = arith.truncf %132 : vector<2x8x8xf32> to vector<2x8x8xbf16>
    %134 = vector.extract_strided_slice %59 {offsets = [0, 0, 8], sizes = [2, 16, 8], strides = [1, 1, 1]} : vector<2x16x32xbf16> to vector<2x16x8xbf16>
    "tpu.trace_start"() <{level = 10 : i32, message = "bqk,bkd->bqd"}> : () -> ()
    %cst_48 = arith.constant dense<0.000000e+00> : vector<2x8x8xf32>
    %135 = tpu.matmul %130, %134, %cst_48 {dimension_numbers = #tpu.dot_dimension_numbers<[2], [1], [1], [2], [0, 0, 0, 1, 1, 2], [0], [0]>} : vector<2x8x16xbf16>, vector<2x16x8xbf16>, vector<2x8x8xf32> -> vector<2x8x8xf32>
    "tpu.trace_stop"() : () -> ()
    %136 = vector.extract_strided_slice %70 {offsets = [0, 0, 8], sizes = [2, 8, 8], strides = [1, 1, 1]} : vector<2x8x32xbf16> to vector<2x8x8xbf16>
    "tpu.trace_start"() <{level = 10 : i32, message = "bqk,bkd->bqd"}> : () -> ()
    %cst_49 = arith.constant dense<0.000000e+00> : vector<2x8x8xf32>
    %137 = tpu.matmul %133, %136, %cst_49 {dimension_numbers = #tpu.dot_dimension_numbers<[2], [1], [1], [2], [0, 0, 0, 1, 1, 2], [0], [0]>} : vector<2x8x8xbf16>, vector<2x8x8xbf16>, vector<2x8x8xf32> -> vector<2x8x8xf32>
    "tpu.trace_stop"() : () -> ()
    %138 = arith.addf %135, %137 : vector<2x8x8xf32>
    %139 = arith.truncf %138 : vector<2x8x8xf32> to vector<2x8x8xbf16>
    %c0_50 = arith.constant 0 : index
    %c0_51 = arith.constant 0 : index
    %c8 = arith.constant 8 : index
    %140 = vector.load %arg12[%c0_50, %c0_51, %c8] : memref<2x8x32xbf16, #tpu.memory_space<vmem>>, vector<2x8x8xbf16>
    tpu.vector_store %arg12[%c0_50, %c0_51, %c8], %139 {strides = array<i32>} : memref<2x8x32xbf16, #tpu.memory_space<vmem>>, vector<2x8x8xbf16>,
    %141 = vector.extract_strided_slice %64 {offsets = [0, 0, 16], sizes = [2, 8, 8], strides = [1, 1, 1]} : vector<2x8x32xbf16> to vector<2x8x8xbf16>
    %142 = vector.extract_strided_slice %55 {offsets = [0, 0, 16], sizes = [2, 16, 8], strides = [1, 1, 1]} : vector<2x16x32xbf16> to vector<2x16x8xbf16>
    "tpu.trace_start"() <{level = 10 : i32, message = "bqd,bkd->bqk"}> : () -> ()
    %cst_52 = arith.constant dense<0.000000e+00> : vector<2x8x16xf32>
    %143 = tpu.matmul %141, %142, %cst_52 {dimension_numbers = #tpu.dot_dimension_numbers<[2], [2], [1], [1], [0, 0, 0, 1, 1, 1], [0], [0]>} : vector<2x8x8xbf16>, vector<2x16x8xbf16>, vector<2x8x16xf32> -> vector<2x8x16xf32>
    "tpu.trace_stop"() : () -> ()
    %144 = vector.extract_strided_slice %67 {offsets = [0, 0, 16], sizes = [2, 8, 8], strides = [1, 1, 1]} : vector<2x8x32xbf16> to vector<2x8x8xbf16>
    "tpu.trace_start"() <{level = 10 : i32, message = "bqd,bkd->bqk"}> : () -> ()
    %cst_53 = arith.constant dense<0.000000e+00> : vector<2x8x8xf32>
    %145 = tpu.matmul %141, %144, %cst_53 {dimension_numbers = #tpu.dot_dimension_numbers<[2], [2], [1], [1], [0, 0, 0, 1, 1, 1], [0], [0]>} : vector<2x8x8xbf16>, vector<2x8x8xbf16>, vector<2x8x8xf32> -> vector<2x8x8xf32>
    "tpu.trace_stop"() : () -> ()
    %cst_54 = arith.constant dense<0xFF800000> : vector<2x8xf32>
    %146 = vector.multi_reduction <maximumf>, %143, %cst_54 [2] : vector<2x8x16xf32> to vector<2x8xf32>
    %147 = vector.shape_cast %146 : vector<2x8xf32> to vector<2x8x1xf32>
    %cst_55 = arith.constant dense<0xFF800000> : vector<2x8xf32>
    %148 = vector.multi_reduction <maximumf>, %145, %cst_55 [2] : vector<2x8x8xf32> to vector<2x8xf32>
    %149 = vector.shape_cast %148 : vector<2x8xf32> to vector<2x8x1xf32>
    %150 = arith.maximumf %147, %149 : vector<2x8x1xf32>
    %151 = vector.broadcast %150 : vector<2x8x1xf32> to vector<2x8x16xf32>
    %152 = arith.subf %143, %151 : vector<2x8x16xf32>
    %153 = math.exp %152 : vector<2x8x16xf32>
    %154 = vector.broadcast %150 : vector<2x8x1xf32> to vector<2x8x8xf32>
    %155 = arith.subf %145, %154 : vector<2x8x8xf32>
    %156 = math.exp %155 : vector<2x8x8xf32>
    %cst_56 = arith.constant dense<0.000000e+00> : vector<2x8xf32>
    %157 = vector.multi_reduction <add>, %153, %cst_56 [2] : vector<2x8x16xf32> to vector<2x8xf32>
    %158 = vector.shape_cast %157 : vector<2x8xf32> to vector<2x8x1xf32>
    %cst_57 = arith.constant dense<0.000000e+00> : vector<2x8xf32>
    %159 = vector.multi_reduction <add>, %156, %cst_57 [2] : vector<2x8x8xf32> to vector<2x8xf32>
    %160 = vector.shape_cast %159 : vector<2x8xf32> to vector<2x8x1xf32>
    %161 = arith.addf %158, %160 : vector<2x8x1xf32>
    %162 = tpu.reciprocal %161 {approx = true} : vector<2x8x1xf32> -> vector<2x8x1xf32>
    %163 = vector.broadcast %162 : vector<2x8x1xf32> to vector<2x8x16xf32>
    %164 = arith.mulf %153, %163 : vector<2x8x16xf32>
    %165 = arith.truncf %164 : vector<2x8x16xf32> to vector<2x8x16xbf16>
    %166 = vector.broadcast %162 : vector<2x8x1xf32> to vector<2x8x8xf32>
    %167 = arith.mulf %156, %166 : vector<2x8x8xf32>
    %168 = arith.truncf %167 : vector<2x8x8xf32> to vector<2x8x8xbf16>
    %169 = vector.extract_strided_slice %59 {offsets = [0, 0, 16], sizes = [2, 16, 8], strides = [1, 1, 1]} : vector<2x16x32xbf16> to vector<2x16x8xbf16>
    "tpu.trace_start"() <{level = 10 : i32, message = "bqk,bkd->bqd"}> : () -> ()
    %cst_58 = arith.constant dense<0.000000e+00> : vector<2x8x8xf32>
    %170 = tpu.matmul %165, %169, %cst_58 {dimension_numbers = #tpu.dot_dimension_numbers<[2], [1], [1], [2], [0, 0, 0, 1, 1, 2], [0], [0]>} : vector<2x8x16xbf16>, vector<2x16x8xbf16>, vector<2x8x8xf32> -> vector<2x8x8xf32>
    "tpu.trace_stop"() : () -> ()
    %171 = vector.extract_strided_slice %70 {offsets = [0, 0, 16], sizes = [2, 8, 8], strides = [1, 1, 1]} : vector<2x8x32xbf16> to vector<2x8x8xbf16>
    "tpu.trace_start"() <{level = 10 : i32, message = "bqk,bkd->bqd"}> : () -> ()
    %cst_59 = arith.constant dense<0.000000e+00> : vector<2x8x8xf32>
    %172 = tpu.matmul %168, %171, %cst_59 {dimension_numbers = #tpu.dot_dimension_numbers<[2], [1], [1], [2], [0, 0, 0, 1, 1, 2], [0], [0]>} : vector<2x8x8xbf16>, vector<2x8x8xbf16>, vector<2x8x8xf32> -> vector<2x8x8xf32>
    "tpu.trace_stop"() : () -> ()
    %173 = arith.addf %170, %172 : vector<2x8x8xf32>
    %174 = arith.truncf %173 : vector<2x8x8xf32> to vector<2x8x8xbf16>
    %c0_60 = arith.constant 0 : index
    %c0_61 = arith.constant 0 : index
    %c16 = arith.constant 16 : index
    %175 = vector.load %arg12[%c0_60, %c0_61, %c16] : memref<2x8x32xbf16, #tpu.memory_space<vmem>>, vector<2x8x8xbf16>
    tpu.vector_store %arg12[%c0_60, %c0_61, %c16], %174 {strides = array<i32>} : memref<2x8x32xbf16, #tpu.memory_space<vmem>>, vector<2x8x8xbf16>,
    %176 = vector.extract_strided_slice %64 {offsets = [0, 0, 24], sizes = [2, 8, 8], strides = [1, 1, 1]} : vector<2x8x32xbf16> to vector<2x8x8xbf16>
    %177 = vector.extract_strided_slice %55 {offsets = [0, 0, 24], sizes = [2, 16, 8], strides = [1, 1, 1]} : vector<2x16x32xbf16> to vector<2x16x8xbf16>
    "tpu.trace_start"() <{level = 10 : i32, message = "bqd,bkd->bqk"}> : () -> ()
    %cst_62 = arith.constant dense<0.000000e+00> : vector<2x8x16xf32>
    %178 = tpu.matmul %176, %177, %cst_62 {dimension_numbers = #tpu.dot_dimension_numbers<[2], [2], [1], [1], [0, 0, 0, 1, 1, 1], [0], [0]>} : vector<2x8x8xbf16>, vector<2x16x8xbf16>, vector<2x8x16xf32> -> vector<2x8x16xf32>
    "tpu.trace_stop"() : () -> ()
    %179 = vector.extract_strided_slice %67 {offsets = [0, 0, 24], sizes = [2, 8, 8], strides = [1, 1, 1]} : vector<2x8x32xbf16> to vector<2x8x8xbf16>
    "tpu.trace_start"() <{level = 10 : i32, message = "bqd,bkd->bqk"}> : () -> ()
    %cst_63 = arith.constant dense<0.000000e+00> : vector<2x8x8xf32>
    %180 = tpu.matmul %176, %179, %cst_63 {dimension_numbers = #tpu.dot_dimension_numbers<[2], [2], [1], [1], [0, 0, 0, 1, 1, 1], [0], [0]>} : vector<2x8x8xbf16>, vector<2x8x8xbf16>, vector<2x8x8xf32> -> vector<2x8x8xf32>
    "tpu.trace_stop"() : () -> ()
    %cst_64 = arith.constant dense<0xFF800000> : vector<2x8xf32>
    %181 = vector.multi_reduction <maximumf>, %178, %cst_64 [2] : vector<2x8x16xf32> to vector<2x8xf32>
    %182 = vector.shape_cast %181 : vector<2x8xf32> to vector<2x8x1xf32>
    %cst_65 = arith.constant dense<0xFF800000> : vector<2x8xf32>
    %183 = vector.multi_reduction <maximumf>, %180, %cst_65 [2] : vector<2x8x8xf32> to vector<2x8xf32>
    %184 = vector.shape_cast %183 : vector<2x8xf32> to vector<2x8x1xf32>
    %185 = arith.maximumf %182, %184 : vector<2x8x1xf32>
    %186 = vector.broadcast %185 : vector<2x8x1xf32> to vector<2x8x16xf32>
    %187 = arith.subf %178, %186 : vector<2x8x16xf32>
    %188 = math.exp %187 : vector<2x8x16xf32>
    %189 = vector.broadcast %185 : vector<2x8x1xf32> to vector<2x8x8xf32>
    %190 = arith.subf %180, %189 : vector<2x8x8xf32>
    %191 = math.exp %190 : vector<2x8x8xf32>
    %cst_66 = arith.constant dense<0.000000e+00> : vector<2x8xf32>
    %192 = vector.multi_reduction <add>, %188, %cst_66 [2] : vector<2x8x16xf32> to vector<2x8xf32>
    %193 = vector.shape_cast %192 : vector<2x8xf32> to vector<2x8x1xf32>
    %cst_67 = arith.constant dense<0.000000e+00> : vector<2x8xf32>
    %194 = vector.multi_reduction <add>, %191, %cst_67 [2] : vector<2x8x8xf32> to vector<2x8xf32>
    %195 = vector.shape_cast %194 : vector<2x8xf32> to vector<2x8x1xf32>
    %196 = arith.addf %193, %195 : vector<2x8x1xf32>
    %197 = tpu.reciprocal %196 {approx = true} : vector<2x8x1xf32> -> vector<2x8x1xf32>
    %198 = vector.broadcast %197 : vector<2x8x1xf32> to vector<2x8x16xf32>
    %199 = arith.mulf %188, %198 : vector<2x8x16xf32>
    %200 = arith.truncf %199 : vector<2x8x16xf32> to vector<2x8x16xbf16>
    %201 = vector.broadcast %197 : vector<2x8x1xf32> to vector<2x8x8xf32>
    %202 = arith.mulf %191, %201 : vector<2x8x8xf32>
    %203 = arith.truncf %202 : vector<2x8x8xf32> to vector<2x8x8xbf16>
    %204 = vector.extract_strided_slice %59 {offsets = [0, 0, 24], sizes = [2, 16, 8], strides = [1, 1, 1]} : vector<2x16x32xbf16> to vector<2x16x8xbf16>
    "tpu.trace_start"() <{level = 10 : i32, message = "bqk,bkd->bqd"}> : () -> ()
    %cst_68 = arith.constant dense<0.000000e+00> : vector<2x8x8xf32>
    %205 = tpu.matmul %200, %204, %cst_68 {dimension_numbers = #tpu.dot_dimension_numbers<[2], [1], [1], [2], [0, 0, 0, 1, 1, 2], [0], [0]>} : vector<2x8x16xbf16>, vector<2x16x8xbf16>, vector<2x8x8xf32> -> vector<2x8x8xf32>
    "tpu.trace_stop"() : () -> ()
    %206 = vector.extract_strided_slice %70 {offsets = [0, 0, 24], sizes = [2, 8, 8], strides = [1, 1, 1]} : vector<2x8x32xbf16> to vector<2x8x8xbf16>
    "tpu.trace_start"() <{level = 10 : i32, message = "bqk,bkd->bqd"}> : () -> ()
    %cst_69 = arith.constant dense<0.000000e+00> : vector<2x8x8xf32>
    %207 = tpu.matmul %203, %206, %cst_69 {dimension_numbers = #tpu.dot_dimension_numbers<[2], [1], [1], [2], [0, 0, 0, 1, 1, 2], [0], [0]>} : vector<2x8x8xbf16>, vector<2x8x8xbf16>, vector<2x8x8xf32> -> vector<2x8x8xf32>
    "tpu.trace_stop"() : () -> ()
    %208 = arith.addf %205, %207 : vector<2x8x8xf32>
    %209 = arith.truncf %208 : vector<2x8x8xf32> to vector<2x8x8xbf16>
    %c0_70 = arith.constant 0 : index
    %c0_71 = arith.constant 0 : index
    %c24 = arith.constant 24 : index
    %210 = vector.load %arg12[%c0_70, %c0_71, %c24] : memref<2x8x32xbf16, #tpu.memory_space<vmem>>, vector<2x8x8xbf16>
    tpu.vector_store %arg12[%c0_70, %c0_71, %c24], %209 {strides = array<i32>} : memref<2x8x32xbf16, #tpu.memory_space<vmem>>, vector<2x8x8xbf16>,
    %c0_72 = arith.constant 0 : index
    %c0_73 = arith.constant 0 : index
    %c0_74 = arith.constant 0 : index
    %211 = vector.load %arg12[%c0_72, %c0_73, %c0_74] : memref<2x8x32xbf16, #tpu.memory_space<vmem>>, vector<2x8x32xbf16>
    %212 = vector.shape_cast %211 : vector<2x8x32xbf16> to vector<16x32xbf16>
    %c0_75 = arith.constant 0 : index
    %c0_76 = arith.constant 0 : index
    %213 = vector.load %arg10[%c0_75, %c0_76] : memref<32x32xbf16, #tpu.memory_space<vmem>>, vector<32x32xbf16>
    %cst_77 = arith.constant dense<0.000000e+00> : vector<16x32xf32>
    %214 = tpu.matmul %212, %213, %cst_77 {dimension_numbers = #tpu.dot_dimension_numbers<[1], [0], [0], [1], [0, 0, 1, 1], [], []>} : vector<16x32xbf16>, vector<32x32xbf16>, vector<16x32xf32> -> vector<16x32xf32>
    %215 = vector.shape_cast %214 : vector<16x32xf32> to vector<2x8x32xf32>
    %c0_78 = arith.constant 0 : index
    %c0_79 = arith.constant 0 : index
    %c0_80 = arith.constant 0 : index
    %216 = vector.load %arg11[%c0_78, %c0_79, %c0_80] : memref<2x8x32xf32, #tpu.memory_space<vmem>>, vector<2x8x32xf32>
    tpu.vector_store %arg11[%c0_78, %c0_79, %c0_80], %215 {strides = array<i32>} : memref<2x8x32xf32, #tpu.memory_space<vmem>>, vector<2x8x32xf32>,
    return
  }
  func.func @transform_0(%arg0: i32) -> (i32, i32, i32) {
    %c0_i32 = arith.constant 0 : i32
    %c0_i32_0 = arith.constant 0 : i32
    %c0_i32_1 = arith.constant 0 : i32
    return %arg0, %c0_i32, %c0_i32_0 : i32, i32, i32
  }
  func.func @transform_1(%arg0: i32) -> (i32, i32, i32) {
    %c0_i32 = arith.constant 0 : i32
    %c0_i32_0 = arith.constant 0 : i32
    %c0_i32_1 = arith.constant 0 : i32
    return %arg0, %c0_i32, %c0_i32_0 : i32, i32, i32
  }
  func.func @transform_2(%arg0: i32) -> (i32, i32) {
    %c0_i32 = arith.constant 0 : i32
    %c0_i32_0 = arith.constant 0 : i32
    %c0_i32_1 = arith.constant 0 : i32
    return %c0_i32, %c0_i32_0 : i32, i32
  }
  func.func @transform_3(%arg0: i32) -> (i32, i32) {
    %c0_i32 = arith.constant 0 : i32
    %c0_i32_0 = arith.constant 0 : i32
    %c0_i32_1 = arith.constant 0 : i32
    return %c0_i32, %c0_i32_0 : i32, i32
  }
  func.func @transform_4(%arg0: i32) -> (i32, i32) {
    %c0_i32 = arith.constant 0 : i32
    %c0_i32_0 = arith.constant 0 : i32
    %c0_i32_1 = arith.constant 0 : i32
    return %c0_i32, %c0_i32_0 : i32, i32
  }
  func.func @transform_5(%arg0: i32) -> (i32, i32) {
    %c0_i32 = arith.constant 0 : i32
    %c0_i32_0 = arith.constant 0 : i32
    %c0_i32_1 = arith.constant 0 : i32
    return %c0_i32, %c0_i32_0 : i32, i32
  }
  func.func @transform_6(%arg0: i32) -> (i32, i32) {
    %c0_i32 = arith.constant 0 : i32
    %c0_i32_0 = arith.constant 0 : i32
    %c0_i32_1 = arith.constant 0 : i32
    return %c0_i32, %c0_i32_0 : i32, i32
  }
  func.func @transform_7(%arg0: i32) -> (i32, i32) {
    %c0_i32 = arith.constant 0 : i32
    %c0_i32_0 = arith.constant 0 : i32
    %c0_i32_1 = arith.constant 0 : i32
    return %c0_i32, %c0_i32_0 : i32, i32
  }
  func.func @transform_8(%arg0: i32) -> (i32, i32) {
    %c0_i32 = arith.constant 0 : i32
    %c0_i32_0 = arith.constant 0 : i32
    %c0_i32_1 = arith.constant 0 : i32
    return %c0_i32, %c0_i32_0 : i32, i32
  }
  func.func @transform_9(%arg0: i32) -> (i32, i32) {
    %c0_i32 = arith.constant 0 : i32
    %c0_i32_0 = arith.constant 0 : i32
    %c0_i32_1 = arith.constant 0 : i32
    return %c0_i32, %c0_i32_0 : i32, i32
  }
  func.func @transform_10(%arg0: i32) -> (i32, i32, i32) {
    %c0_i32 = arith.constant 0 : i32
    %c0_i32_0 = arith.constant 0 : i32
    %c0_i32_1 = arith.constant 0 : i32
    return %arg0, %c0_i32, %c0_i32_0 : i32, i32, i32
  }
}

</mosaic_0001>

<llo_original>
// kernel: tpu_custom_call.1
$region0: #{tpu_custom_call.1}
  #allocation0 [shape = 'u32[]', space=smem, size = 0x4, offset = 0x4, fixed_abs, tag = 'smem constant byte address 0x4 - core index']
  #allocation1 [shape = 'u32[144,128]{1,0:T(1,128)}', space=vmem, size = 0x12000, scoped, tag = 'internal scratch']
  #allocation2 [shape = 'bf16[2,8,32]{2,1,0:T(8,128)(2,1)}', space=vmem, size = 0x1000, scoped, tag = 'scratch operand']
  %s0 = inlined_call_operand.hbm [shape: bf16[2,16,32], index: 0, kind: input, shape index: {}]
  %s1 = inlined_call_operand.hbm [shape: bf16[2,8,32], index: 1, kind: input, shape index: {}]
  %s2 = inlined_call_operand.hbm [shape: f32[1,32], index: 2, kind: input, shape index: {}]
  %s3 = inlined_call_operand.hbm [shape: f32[1,32], index: 3, kind: input, shape index: {}]
  %s4 = inlined_call_operand.hbm [shape: f32[1,32], index: 4, kind: input, shape index: {}]
  %s5 = inlined_call_operand.hbm [shape: f32[1,32], index: 5, kind: input, shape index: {}]
  %s6 = inlined_call_operand.hbm [shape: bf16[32,96], index: 6, kind: input, shape index: {}]
  %s7 = inlined_call_operand.hbm [shape: bf16[32,32], index: 7, kind: input, shape index: {}]
  %s8 = inlined_call_operand.hbm [shape: bf16[32,32], index: 8, kind: input, shape index: {}]
  %s9 = inlined_call_operand.vmem [shape: bf16[32,32], index: 9, kind: input, shape index: {}]
  %s10 = inlined_call_operand.hbm [shape: f32[2,8,32], index: 10, kind: output, shape index: {}]
  %s11 = sld [smem:[#allocation0]]
  $region86: #{tpu_custom_call.1} parent=0
    _
  %s13 = ssub.s32 1, %s11
  %s14 = scalar_select 0, %s13, %s11
  $region1: #{tpu_custom_call.1} parent=0
    #allocation3 [shape = 'u8[8192]{0}', space=vmem, size = 0x2000, scoped, tag = 'input window, operand 0, single buffered']
    #allocation4 [shape = 's32[1]{0}', space=sflag, size = 0x4, scoped, tag = 'scoped memory for tpu_custom_call.1']
    #allocation5 [shape = 's32[1]{0}', space=sflag, size = 0x4, scoped, tag = 'scoped memory for tpu_custom_call.1']
    #allocation6 [shape = 'u8[4096]{0}', space=vmem, size = 0x1000, scoped, tag = 'input window, operand 1, single buffered']
    #allocation7 [shape = 's32[1]{0}', space=sflag, size = 0x4, scoped, tag = 'scoped memory for tpu_custom_call.1']
    #allocation8 [shape = 'u8[512]{0}', space=vmem, size = 0x400, scoped, tag = 'input window, operand 2, single buffered']
    #allocation9 [shape = 'u8[512]{0}', space=vmem, size = 0x400, scoped, tag = 'input window, operand 3, single buffered']
    #allocation10 [shape = 's32[1]{0}', space=sflag, size = 0x4, scoped, tag = 'scoped memory for tpu_custom_call.1']
    #allocation11 [shape = 'u8[512]{0}', space=vmem, size = 0x400, scoped, tag = 'input window, operand 4, single buffered']
    #allocation12 [shape = 'u8[512]{0}', space=vmem, size = 0x400, scoped, tag = 'input window, operand 5, single buffered']
    #allocation13 [shape = 's32[1]{0}', space=sflag, size = 0x4, scoped, tag = 'scoped memory for tpu_custom_call.1']
    #allocation14 [shape = 'u8[8192]{0}', space=vmem, size = 0x2000, scoped, tag = 'input window, operand 6, single buffered']
    #allocation15 [shape = 'u8[8192]{0}', space=vmem, size = 0x2000, scoped, tag = 'input window, operand 7, single buffered']
    #allocation16 [shape = 's32[1]{0}', space=sflag, size = 0x4, scoped, tag = 'scoped memory for tpu_custom_call.1']
    #allocation17 [shape = 'u8[8192]{0}', space=vmem, size = 0x2000, scoped, tag = 'input window, operand 8, single buffered']
    #allocation18 [shape = 'u8[8192]{0}', space=vmem, size = 0x2000, scoped, tag = 'output window, operand 0, single buffered']
    %15 = vsyncpa [#allocation4], 0
    %16 = vsyncpa [#allocation7], 0
    %17 = vsyncpa [#allocation10], 0
    %18 = vsyncpa [#allocation13], 0
    %19 = vsyncpa [#allocation16], 0
    %20 = vsyncpa [#allocation5], 0
    // Predicated region
    $region2: #{tpu_custom_call.1} parent=1 // pred_check
      _
    $region3: #{tpu_custom_call.1} parent=1 // pred_check_branch
      %22 = sbr.rel (0) target = $region5
    $region4: #{tpu_custom_call.1} parent=1 // pred_region
      %s24 = ssub.s32 256, 256
      %25 = vsyncadd [#allocation4], %s24
      %s26 = sshll.u32 [#allocation3], 4
      %s27 = int_to_ptr.vmem [resolvable:$true] %s26
      %32 = dma.hbm_to_vmem [thread:$0]  %s0, 256, %s27, [#allocation4], 64, 64, 4
    $region5: #{tpu_custom_call.1} parent=1 // pred_fallthru
      _
    // Predicated region
    $region6: #{tpu_custom_call.1} parent=1 // pred_check
      _
    $region7: #{tpu_custom_call.1} parent=1 // pred_check_branch
      %34 = sbr.rel (0) target = $region9
    $region8: #{tpu_custom_call.1} parent=1 // pred_region
      %s36 = ssub.s32 128, 128
      %37 = vsyncadd [#allocation7], %s36
      %s38 = sshll.u32 [#allocation6], 4
      %s39 = int_to_ptr.vmem [resolvable:$true] %s38
      %44 = dma.hbm_to_vmem [thread:$0]  %s1, 128, %s39, [#allocation7], 64, 64, 4
    $region9: #{tpu_custom_call.1} parent=1 // pred_fallthru
      _
    // Predicated region
    $region10: #{tpu_custom_call.1} parent=1 // pred_check
      _
    $region11: #{tpu_custom_call.1} parent=1 // pred_check_branch
      %46 = sbr.rel (0) target = $region13
    $region12: #{tpu_custom_call.1} parent=1 // pred_region
      %s48 = ssub.s32 16, 16
      %49 = vsyncadd [#allocation7], %s48
      %s51 = sshll.u32 [#allocation8], 4
      %s52 = int_to_ptr.vmem [resolvable:$true] %s51
      %54 = dma.hbm_to_vmem [thread:$0]  %s2, 16, %s52, [#allocation7]
    $region13: #{tpu_custom_call.1} parent=1 // pred_fallthru
      _
    // Predicated region
    $region14: #{tpu_custom_call.1} parent=1 // pred_check
      _
    $region15: #{tpu_custom_call.1} parent=1 // pred_check_branch
      %56 = sbr.rel (0) target = $region17
    $region16: #{tpu_custom_call.1} parent=1 // pred_region
      %s58 = ssub.s32 16, 16
      %59 = vsyncadd [#allocation10], %s58
      %s61 = sshll.u32 [#allocation9], 4
      %s62 = int_to_ptr.vmem [resolvable:$true] %s61
      %64 = dma.hbm_to_vmem [thread:$0]  %s3, 16, %s62, [#allocation10]
    $region17: #{tpu_custom_call.1} parent=1 // pred_fallthru
      _
    // Predicated region
    $region18: #{tpu_custom_call.1} parent=1 // pred_check
      _
    $region19: #{tpu_custom_call.1} parent=1 // pred_check_branch
      %66 = sbr.rel (0) target = $region21
    $region20: #{tpu_custom_call.1} parent=1 // pred_region
      %s68 = ssub.s32 16, 16
      %69 = vsyncadd [#allocation10], %s68
      %s71 = sshll.u32 [#allocation11], 4
      %s72 = int_to_ptr.vmem [resolvable:$true] %s71
      %74 = dma.hbm_to_vmem [thread:$0]  %s4, 16, %s72, [#allocation10]
    $region21: #{tpu_custom_call.1} parent=1 // pred_fallthru
      _
    // Predicated region
    $region22: #{tpu_custom_call.1} parent=1 // pred_check
      _
    $region23: #{tpu_custom_call.1} parent=1 // pred_check_branch
      %76 = sbr.rel (0) target = $region25
    $region24: #{tpu_custom_call.1} parent=1 // pred_region
      %s78 = ssub.s32 16, 16
      %79 = vsyncadd [#allocation13], %s78
      %s81 = sshll.u32 [#allocation12], 4
      %s82 = int_to_ptr.vmem [resolvable:$true] %s81
      %84 = dma.hbm_to_vmem [thread:$0]  %s5, 16, %s82, [#allocation13]
    $region25: #{tpu_custom_call.1} parent=1 // pred_fallthru
      _
    // Predicated region
    $region26: #{tpu_custom_call.1} parent=1 // pred_check
      _
    $region27: #{tpu_custom_call.1} parent=1 // pred_check_branch
      %86 = sbr.rel (0) target = $region29
    $region28: #{tpu_custom_call.1} parent=1 // pred_region
      %s88 = ssub.s32 256, 256
      %89 = vsyncadd [#allocation13], %s88
      %s90 = sshll.u32 [#allocation14], 4
      %s91 = int_to_ptr.vmem [resolvable:$true] %s90
      %96 = dma.hbm_to_vmem [thread:$0]  %s6, 256, %s91, [#allocation13], 64, 64, 4
    $region29: #{tpu_custom_call.1} parent=1 // pred_fallthru
      _
    // Predicated region
    $region30: #{tpu_custom_call.1} parent=1 // pred_check
      _
    $region31: #{tpu_custom_call.1} parent=1 // pred_check_branch
      %98 = sbr.rel (0) target = $region33
    $region32: #{tpu_custom_call.1} parent=1 // pred_region
      %s100 = ssub.s32 256, 256
      %101 = vsyncadd [#allocation16], %s100
      %s102 = sshll.u32 [#allocation15], 4
      %s103 = int_to_ptr.vmem [resolvable:$true] %s102
      %108 = dma.hbm_to_vmem [thread:$0]  %s7, 256, %s103, [#allocation16], 64, 64, 4
    $region33: #{tpu_custom_call.1} parent=1 // pred_fallthru
      _
    // Predicated region
    $region34: #{tpu_custom_call.1} parent=1 // pred_check
      _
    $region35: #{tpu_custom_call.1} parent=1 // pred_check_branch
      %110 = sbr.rel (0) target = $region37
    $region36: #{tpu_custom_call.1} parent=1 // pred_region
      %s112 = ssub.s32 256, 256
      %113 = vsyncadd [#allocation16], %s112
      %s114 = sshll.u32 [#allocation17], 4
      %s115 = int_to_ptr.vmem [resolvable:$true] %s114
      %120 = dma.hbm_to_vmem [thread:$0]  %s8, 256, %s115, [#allocation16], 64, 64, 4
    $region37: #{tpu_custom_call.1} parent=1 // pred_fallthru
      _
    // Predicated region
    $region38: #{tpu_custom_call.1} parent=1 // pred_check
      _
    $region39: #{tpu_custom_call.1} parent=1 // pred_check_branch
      %122 = sbr.rel (0) target = $region41
    $region40: #{tpu_custom_call.1} parent=1 // pred_region
      _
    $region41: #{tpu_custom_call.1} parent=1 // pred_fallthru
      _
    // Predicated region
    $region42: #{tpu_custom_call.1} parent=1 // pred_check
      _
    $region43: #{tpu_custom_call.1} parent=1 // pred_check_branch
      %124 = sbr.rel (0) target = $region45
    $region44: #{tpu_custom_call.1} parent=1 // pred_region
      %125 = dma.done [#allocation4], 256
    $region45: #{tpu_custom_call.1} parent=1 // pred_fallthru
      _
    // Predicated region
    $region46: #{tpu_custom_call.1} parent=1 // pred_check
      _
    $region47: #{tpu_custom_call.1} parent=1 // pred_check_branch
      %127 = sbr.rel (0) target = $region49
    $region48: #{tpu_custom_call.1} parent=1 // pred_region
      %128 = dma.done [#allocation7], 128
    $region49: #{tpu_custom_call.1} parent=1 // pred_fallthru
      _
    // Predicated region
    $region50: #{tpu_custom_call.1} parent=1 // pred_check
      _
    $region51: #{tpu_custom_call.1} parent=1 // pred_check_branch
      %130 = sbr.rel (0) target = $region53
    $region52: #{tpu_custom_call.1} parent=1 // pred_region
      %131 = dma.done [#allocation7], 16
    $region53: #{tpu_custom_call.1} parent=1 // pred_fallthru
      _
    // Predicated region
    $region54: #{tpu_custom_call.1} parent=1 // pred_check
      _
    $region55: #{tpu_custom_call.1} parent=1 // pred_check_branch
      %133 = sbr.rel (0) target = $region57
    $region56: #{tpu_custom_call.1} parent=1 // pred_region
      %134 = dma.done [#allocation10], 16
    $region57: #{tpu_custom_call.1} parent=1 // pred_fallthru
      _
    // Predicated region
    $region58: #{tpu_custom_call.1} parent=1 // pred_check
      _
    $region59: #{tpu_custom_call.1} parent=1 // pred_check_branch
      %136 = sbr.rel (0) target = $region61
    $region60: #{tpu_custom_call.1} parent=1 // pred_region
      %137 = dma.done [#allocation10], 16
    $region61: #{tpu_custom_call.1} parent=1 // pred_fallthru
      _
    // Predicated region
    $region62: #{tpu_custom_call.1} parent=1 // pred_check
      _
    $region63: #{tpu_custom_call.1} parent=1 // pred_check_branch
      %139 = sbr.rel (0) target = $region65
    $region64: #{tpu_custom_call.1} parent=1 // pred_region
      %140 = dma.done [#allocation13], 16
    $region65: #{tpu_custom_call.1} parent=1 // pred_fallthru
      _
    // Predicated region
    $region66: #{tpu_custom_call.1} parent=1 // pred_check
      _
    $region67: #{tpu_custom_call.1} parent=1 // pred_check_branch
      %142 = sbr.rel (0) target = $region69
    $region68: #{tpu_custom_call.1} parent=1 // pred_region
      %143 = dma.done [#allocation13], 256
    $region69: #{tpu_custom_call.1} parent=1 // pred_fallthru
      _
    // Predicated region
    $region70: #{tpu_custom_call.1} parent=1 // pred_check
      _
    $region71: #{tpu_custom_call.1} parent=1 // pred_check_branch
      %145 = sbr.rel (0) target = $region73
    $region72: #{tpu_custom_call.1} parent=1 // pred_region
      %146 = dma.done [#allocation16], 256
    $region73: #{tpu_custom_call.1} parent=1 // pred_fallthru
      _
    // Predicated region
    $region74: #{tpu_custom_call.1} parent=1 // pred_check
      _
    $region75: #{tpu_custom_call.1} parent=1 // pred_check_branch
      %148 = sbr.rel (0) target = $region77
    $region76: #{tpu_custom_call.1} parent=1 // pred_region
      %149 = dma.done [#allocation16], 256
    $region77: #{tpu_custom_call.1} parent=1 // pred_fallthru
      _
    %v151 = vld [vmem:[#allocation3] sm:$0xf]
    %v152 = vld [vmem:[#allocation3 + $0x4] sm:$0xf]
    %v153 = vld [vmem:[#allocation3 + $0x8] sm:$0xf]
    %v154 = vld [vmem:[#allocation3 + $0xc] sm:$0xf]
    %v155 = vunpack.c.l.bf16 %v151
    %v156 = vunpack.c.l.bf16 %v152
    %v157 = vunpack.c.l.bf16 %v153
    %v158 = vunpack.c.l.bf16 %v154
    %v159 = vld [vmem:[#allocation8] sm:$0x1]
    %v160 = vld [vmem:[#allocation9] sm:$0x1]
    %vm161 = vcmask 261120
    %v162 = vsel %vm161, %v155, 0.0
    %163 = vadd.xlane.f32.xlu0 %v162
    %v164 = vpop.xlane.xlu0 %163
    %v165 = vsel %vm161, %v156, 0.0
    %166 = vadd.xlane.f32.xlu0 %v165
    %v167 = vpop.xlane.xlu0 %166
    %v168 = vsel %vm161, %v157, 0.0
    %169 = vadd.xlane.f32.xlu0 %v168
    %v170 = vpop.xlane.xlu0 %169
    %v171 = vsel %vm161, %v158, 0.0
    %172 = vadd.xlane.f32.xlu0 %v171
    %v173 = vpop.xlane.xlu0 %172
    %v174 = vrcp.pop 32.0
    %v175 = vmul.f32 %v164, %v174
    %v176 = vmul.f32 %v167, %v174
    %v177 = vmul.f32 %v170, %v174
    %v178 = vmul.f32 %v173, %v174
    %v179 = vsub.f32 %v155, %v175
    %v180 = vsub.f32 %v156, %v176
    %v181 = vsub.f32 %v157, %v177
    %v182 = vsub.f32 %v158, %v178
    %v183 = vmul.f32 %v179, %v179
    %v184 = vmul.f32 %v180, %v180
    %v185 = vmul.f32 %v181, %v181
    %v186 = vmul.f32 %v182, %v182
    %v187 = vsel %vm161, %v183, 0.0
    %188 = vadd.xlane.f32.xlu0 %v187
    %v189 = vpop.xlane.xlu0 %188
    %v190 = vsel %vm161, %v184, 0.0
    %191 = vadd.xlane.f32.xlu0 %v190
    %v192 = vpop.xlane.xlu0 %191
    %v193 = vsel %vm161, %v185, 0.0
    %194 = vadd.xlane.f32.xlu0 %v193
    %v195 = vpop.xlane.xlu0 %194
    %v196 = vsel %vm161, %v186, 0.0
    %197 = vadd.xlane.f32.xlu0 %v196
    %v198 = vpop.xlane.xlu0 %197
    %v199 = vmul.f32 %v189, %v174
    %v200 = vmul.f32 %v192, %v174
    %v201 = vmul.f32 %v195, %v174
    %v202 = vmul.f32 %v198, %v174
    %v203 = vadd.f32 %v199, 1e-05
    %v204 = vadd.f32 %v200, 1e-05
    %v205 = vadd.f32 %v201, 1e-05
    %v206 = vadd.f32 %v202, 1e-05
    %v207 = vrsqrt.pop %v203
    %v208 = vrsqrt.pop %v204
    %v209 = vrsqrt.pop %v205
    %v210 = vrsqrt.pop %v206
    %v211 = vmul.f32 %v179, %v207
    %v212 = vmul.f32 %v180, %v208
    %v213 = vmul.f32 %v181, %v209
    %v214 = vmul.f32 %v182, %v210
    %v216 = vlaneseq
    %v217 = vshrl.u32 %v216, 7
    %v218 = vsub.s32 0, %v217
    %v219 = vrot.slane %v159, %v218
    %v221 = vmul.f32 %v211, %v219
    %v222 = vmul.f32 %v212, %v219
    %v223 = vmul.f32 %v213, %v219
    %v224 = vmul.f32 %v214, %v219
    %v226 = vlaneseq
    %v227 = vshrl.u32 %v226, 7
    %v228 = vsub.s32 0, %v227
    %v229 = vrot.slane %v160, %v228
    %v231 = vadd.f32 %v221, %v229
    %v232 = vadd.f32 %v222, %v229
    %v233 = vadd.f32 %v223, %v229
    %v234 = vadd.f32 %v224, %v229
    %v235 = vpack.c.bf16 %v232, %v231
    %v236 = vpack.c.bf16 %v234, %v233
    %v237 = vld [vmem:[#allocation6] sm:$0xf]
    %v238 = vld [vmem:[#allocation6 + $0x4] sm:$0xf]
    %v239 = vunpack.c.l.bf16 %v237
    %v240 = vunpack.c.l.bf16 %v238
    %v241 = vld [vmem:[#allocation11] sm:$0x1]
    %v242 = vld [vmem:[#allocation12] sm:$0x1]
    %v243 = vsel %vm161, %v239, 0.0
    %244 = vadd.xlane.f32.xlu0 %v243
    %v245 = vpop.xlane.xlu0 %244
    %v246 = vsel %vm161, %v240, 0.0
    %247 = vadd.xlane.f32.xlu0 %v246
    %v248 = vpop.xlane.xlu0 %247
    %v249 = vmul.f32 %v245, %v174
    %v250 = vmul.f32 %v248, %v174
    %v251 = vsub.f32 %v239, %v249
    %v252 = vsub.f32 %v240, %v250
    %v253 = vmul.f32 %v251, %v251
    %v254 = vmul.f32 %v252, %v252
    %v255 = vsel %vm161, %v253, 0.0
    %256 = vadd.xlane.f32.xlu0 %v255
    %v257 = vpop.xlane.xlu0 %256
    %v258 = vsel %vm161, %v254, 0.0
    %259 = vadd.xlane.f32.xlu0 %v258
    %v260 = vpop.xlane.xlu0 %259
    %v261 = vmul.f32 %v257, %v174
    %v262 = vmul.f32 %v260, %v174
    %v263 = vadd.f32 %v261, 1e-05
    %v264 = vadd.f32 %v262, 1e-05
    %v265 = vrsqrt.pop %v263
    %v266 = vrsqrt.pop %v264
    %v267 = vmul.f32 %v251, %v265
    %v268 = vmul.f32 %v252, %v266
    %v270 = vlaneseq
    %v271 = vshrl.u32 %v270, 7
    %v272 = vsub.s32 0, %v271
    %v273 = vrot.slane %v241, %v272
    %v275 = vmul.f32 %v267, %v273
    %v276 = vmul.f32 %v268, %v273
    %v278 = vlaneseq
    %v279 = vshrl.u32 %v278, 7
    %v280 = vsub.s32 0, %v279
    %v281 = vrot.slane %v242, %v280
    %v283 = vadd.f32 %v275, %v281
    %v284 = vadd.f32 %v276, %v281
    %v285 = vpack.c.bf16 %v284, %v283
    %v286 = vld [vmem:[#allocation15] sm:$0xf]
    %v287 = vld [vmem:[#allocation15 + $0x4] sm:$0xf]
    %v288 = vld [vmem:[#allocation15 + $0x8] sm:$0xf]
    %v289 = vld [vmem:[#allocation15 + $0xc] sm:$0xf]
    %v294 = vunpack.c.l.b16 %v286
    %v295 = vunpack.c.l.b16 %v287
    %v296 = vunpack.c.l.b16 %v288
    %v297 = vunpack.c.l.b16 %v289
    %v298 = vpack.c.b16 %v295, %v294
    %v299 = vpack.c.b16 %v297, %v296
    %v303 = vsel %vm161, %v235, 0
    %v306 = vsel %vm161, %v236, 0
    %308 = vmatprep.subr.bf16.mxu0 0
    %309 = vmatpush1.bf16.msra.mxu0 0
    %310 = vmatprep.subr.bf16.mxu0 0
    %311 = vmatpush1.bf16.msra.mxu0 0
    %312 = vmatprep.subr.bf16.mxu0 0
    %313 = vmatpush1.bf16.msra.mxu0 0
    %314 = vmatprep.subr.bf16.mxu0 0
    %315 = vmatpush1.bf16.msra.mxu0 0
    %316 = vmatprep.subr.bf16.mxu0 0
    %317 = vmatpush1.bf16.msra.mxu0 0
    %318 = vmatprep.subr.bf16.mxu0 0
    %319 = vmatpush1.bf16.msra.mxu0 0
    %320 = vmatprep.subr.bf16.mxu0 0
    %321 = vmatpush1.bf16.msra.mxu0 %v299
    %322 = vmatprep.subr.bf16.mxu0 0
    %323 = vmatpush1.bf16.msra.mxu0 %v298
    %324 = vmatprep.subr.bf16.mxu0 0
    %325 = vmatpush2.bf16.msra.mxu0 0
    %326 = vmatprep.subr.bf16.mxu0 0
    %327 = vmatpush2.bf16.msra.mxu0 0
    %328 = vmatprep.subr.bf16.mxu0 0
    %329 = vmatpush2.bf16.msra.mxu0 0
    %330 = vmatprep.subr.bf16.mxu0 0
    %331 = vmatpush2.bf16.msra.mxu0 0
    %332 = vmatprep.subr.bf16.mxu0 0
    %333 = vmatpush2.bf16.msra.mxu0 0
    %334 = vmatprep.subr.bf16.mxu0 0
    %335 = vmatpush2.bf16.msra.mxu0 0
    %336 = vmatprep.subr.bf16.mxu0 0
    %337 = vmatpush2.bf16.msra.mxu0 0
    %338 = vmatprep.subr.bf16.mxu0 0
    %339 = vmatpush2.bf16.msra.mxu0 0
    %340 = vmatprep.mubr.bf16.mxu0 0
    %341 = vmatmul.mubr.bf16.gmra.mxu0 %v303
    %v342 = vpop.f32.mrf.mxu0
    %v343 = vadd.f32 0.0, %v342
    %v344 = vpop.f32.mrf.mxu0
    %v345 = vpop.f32.mrf.mxu0
    %v346 = vadd.f32 0.0, %v345
    %v347 = vpop.f32.mrf.mxu0
    %348 = vmatprep.mubr.bf16.mxu0 0
    %349 = vmatmul.mubr.bf16.gmra.mxu0 %v306
    %v350 = vpop.f32.mrf.mxu0
    %v351 = vadd.f32 0.0, %v350
    %v352 = vpop.f32.mrf.mxu0
    %v353 = vpop.f32.mrf.mxu0
    %v354 = vadd.f32 0.0, %v353
    %v355 = vpop.f32.mrf.mxu0
    %356 = vdwg.mxu0
    %v357 = vpack.c.bf16 %v346, %v343
    %v358 = vpack.c.bf16 %v354, %v351
    %v359 = vld [vmem:[#allocation17] sm:$0xf]
    %v360 = vld [vmem:[#allocation17 + $0x4] sm:$0xf]
    %v361 = vld [vmem:[#allocation17 + $0x8] sm:$0xf]
    %v362 = vld [vmem:[#allocation17 + $0xc] sm:$0xf]
    %v367 = vunpack.c.l.b16 %v359
    %v368 = vunpack.c.l.b16 %v360
    %v369 = vunpack.c.l.b16 %v361
    %v370 = vunpack.c.l.b16 %v362
    %v371 = vpack.c.b16 %v368, %v367
    %v372 = vpack.c.b16 %v370, %v369
    %375 = vmatprep.subr.bf16.mxu0 0
    %376 = vmatpush1.bf16.msra.mxu0 0
    %377 = vmatprep.subr.bf16.mxu0 0
    %378 = vmatpush1.bf16.msra.mxu0 0
    %379 = vmatprep.subr.bf16.mxu0 0
    %380 = vmatpush1.bf16.msra.mxu0 0
    %381 = vmatprep.subr.bf16.mxu0 0
    %382 = vmatpush1.bf16.msra.mxu0 0
    %383 = vmatprep.subr.bf16.mxu0 0
    %384 = vmatpush1.bf16.msra.mxu0 0
    %385 = vmatprep.subr.bf16.mxu0 0
    %386 = vmatpush1.bf16.msra.mxu0 0
    %387 = vmatprep.subr.bf16.mxu0 0
    %388 = vmatpush1.bf16.msra.mxu0 %v372
    %389 = vmatprep.subr.bf16.mxu0 0
    %390 = vmatpush1.bf16.msra.mxu0 %v371
    %391 = vmatprep.subr.bf16.mxu0 0
    %392 = vmatpush2.bf16.msra.mxu0 0
    %393 = vmatprep.subr.bf16.mxu0 0
    %394 = vmatpush2.bf16.msra.mxu0 0
    %395 = vmatprep.subr.bf16.mxu0 0
    %396 = vmatpush2.bf16.msra.mxu0 0
    %397 = vmatprep.subr.bf16.mxu0 0
    %398 = vmatpush2.bf16.msra.mxu0 0
    %399 = vmatprep.subr.bf16.mxu0 0
    %400 = vmatpush2.bf16.msra.mxu0 0
    %401 = vmatprep.subr.bf16.mxu0 0
    %402 = vmatpush2.bf16.msra.mxu0 0
    %403 = vmatprep.subr.bf16.mxu0 0
    %404 = vmatpush2.bf16.msra.mxu0 0
    %405 = vmatprep.subr.bf16.mxu0 0
    %406 = vmatpush2.bf16.msra.mxu0 0
    %407 = vmatprep.mubr.bf16.mxu0 0
    %408 = vmatmul.mubr.bf16.gmra.mxu0 %v303
    %v409 = vpop.f32.mrf.mxu0
    %v410 = vadd.f32 0.0, %v409
    %v411 = vpop.f32.mrf.mxu0
    %v412 = vpop.f32.mrf.mxu0
    %v413 = vadd.f32 0.0, %v412
    %v414 = vpop.f32.mrf.mxu0
    %415 = vmatprep.mubr.bf16.mxu0 0
    %416 = vmatmul.mubr.bf16.gmra.mxu0 %v306
    %v417 = vpop.f32.mrf.mxu0
    %v418 = vadd.f32 0.0, %v417
    %v419 = vpop.f32.mrf.mxu0
    %v420 = vpop.f32.mrf.mxu0
    %v421 = vadd.f32 0.0, %v420
    %v422 = vpop.f32.mrf.mxu0
    %423 = vdwg.mxu0
    %v424 = vpack.c.bf16 %v413, %v410
    %v425 = vpack.c.bf16 %v421, %v418
    %v426 = vld [vmem:[#allocation14] sm:$0xf]
    %v427 = vld [vmem:[#allocation14 + $0x4] sm:$0xf]
    %v428 = vld [vmem:[#allocation14 + $0x8] sm:$0xf]
    %v429 = vld [vmem:[#allocation14 + $0xc] sm:$0xf]
    %v434 = vunpack.c.l.b16 %v426
    %v435 = vunpack.c.l.b16 %v427
    %v436 = vunpack.c.l.b16 %v428
    %v437 = vunpack.c.l.b16 %v429
    %v438 = vpack.c.b16 %v435, %v434
    %v439 = vpack.c.b16 %v437, %v436
    %v443 = vsel %vm161, %v285, 0
    %445 = vmatprep.subr.bf16.mxu0 0
    %446 = vmatpush1.bf16.msra.mxu0 0
    %447 = vmatprep.subr.bf16.mxu0 0
    %448 = vmatpush1.bf16.msra.mxu0 0
    %449 = vmatprep.subr.bf16.mxu0 0
    %450 = vmatpush1.bf16.msra.mxu0 0
    %451 = vmatprep.subr.bf16.mxu0 0
    %452 = vmatpush1.bf16.msra.mxu0 0
    %453 = vmatprep.subr.bf16.mxu0 0
    %454 = vmatpush1.bf16.msra.mxu0 0
    %455 = vmatprep.subr.bf16.mxu0 0
    %456 = vmatpush1.bf16.msra.mxu0 0
    %457 = vmatprep.subr.bf16.mxu0 0
    %458 = vmatpush1.bf16.msra.mxu0 %v439
    %459 = vmatprep.subr.bf16.mxu0 0
    %460 = vmatpush1.bf16.msra.mxu0 %v438
    %461 = vmatprep.subr.bf16.mxu0 0
    %462 = vmatpush2.bf16.msra.mxu0 0
    %463 = vmatprep.subr.bf16.mxu0 0
    %464 = vmatpush2.bf16.msra.mxu0 0
    %465 = vmatprep.subr.bf16.mxu0 0
    %466 = vmatpush2.bf16.msra.mxu0 0
    %467 = vmatprep.subr.bf16.mxu0 0
    %468 = vmatpush2.bf16.msra.mxu0 0
    %469 = vmatprep.subr.bf16.mxu0 0
    %470 = vmatpush2.bf16.msra.mxu0 0
    %471 = vmatprep.subr.bf16.mxu0 0
    %472 = vmatpush2.bf16.msra.mxu0 0
    %473 = vmatprep.subr.bf16.mxu0 0
    %474 = vmatpush2.bf16.msra.mxu0 0
    %475 = vmatprep.subr.bf16.mxu0 0
    %476 = vmatpush2.bf16.msra.mxu0 0
    %477 = vmatprep.mubr.bf16.mxu0 0
    %478 = vmatmul.mubr.bf16.gmra.mxu0 %v443
    %v479 = vpop.f32.mrf.mxu0
    %v480 = vadd.f32 0.0, %v479
    %v481 = vpop.f32.mrf.mxu0
    %v482 = vpop.f32.mrf.mxu0
    %v483 = vadd.f32 0.0, %v482
    %v484 = vpop.f32.mrf.mxu0
    %485 = vdwg.mxu0
    %v486 = vpack.c.bf16 %v483, %v480
    %v488 = vunpack.c.l.b16 %v486
    %v489 = vunpack.c.h.b16 %v486
    %v490 = vpack.c.b16 %v488, %v488
    %v491 = vpack.c.b16 %v489, %v489
    %vm492 = vcmask 64512
    %v494 = vsel %vm492, %v490, 0
    %v497 = vsel %vm492, %v357, 0
    %499 = vmatprep.subr.bf16.mxu0 0
    %500 = vmatpush1.bf16.xpose.msra.mxu0 0
    %501 = vmatprep.subr.bf16.mxu0 0
    %502 = vmatpush1.bf16.xpose.msra.mxu0 0
    %503 = vmatprep.subr.bf16.mxu0 0
    %504 = vmatpush1.bf16.xpose.msra.mxu0 0
    %505 = vmatprep.subr.bf16.mxu0 0
    %506 = vmatpush1.bf16.xpose.msra.mxu0 0
    %507 = vmatprep.subr.bf16.mxu0 0
    %508 = vmatpush1.bf16.xpose.msra.mxu0 0
    %509 = vmatprep.subr.bf16.mxu0 0
    %510 = vmatpush1.bf16.xpose.msra.mxu0 0
    %511 = vmatprep.subr.bf16.mxu0 0
    %512 = vmatpush1.bf16.xpose.msra.mxu0 0
    %513 = vmatprep.subr.bf16.mxu0 0
    %514 = vmatpush1.bf16.xpose.msra.mxu0 %v497
    %515 = vmatprep.subr.bf16.mxu0 0
    %516 = vmatpush2.bf16.xpose.msra.mxu0 0
    %517 = vmatprep.subr.bf16.mxu0 0
    %518 = vmatpush2.bf16.xpose.msra.mxu0 0
    %519 = vmatprep.subr.bf16.mxu0 0
    %520 = vmatpush2.bf16.xpose.msra.mxu0 0
    %521 = vmatprep.subr.bf16.mxu0 0
    %522 = vmatpush2.bf16.xpose.msra.mxu0 0
    %523 = vmatprep.subr.bf16.mxu0 0
    %524 = vmatpush2.bf16.xpose.msra.mxu0 0
    %525 = vmatprep.subr.bf16.mxu0 0
    %526 = vmatpush2.bf16.xpose.msra.mxu0 0
    %527 = vmatprep.subr.bf16.mxu0 0
    %528 = vmatpush2.bf16.xpose.msra.mxu0 0
    %529 = vmatprep.subr.bf16.mxu0 0
    %530 = vmatpush2.bf16.xpose.msra.mxu0 0
    %531 = vmatprep.mubr.bf16.mxu0 0
    %532 = vmatmul.mubr.bf16.gmra.mxu0 %v494
    %v533 = vpop.f32.mrf.mxu0
    %v534 = vadd.f32 0.0, %v533
    %v535 = vpop.f32.mrf.mxu0
    %v536 = vpop.f32.mrf.mxu0
    %v537 = vpop.f32.mrf.mxu0
    %538 = vdwg.mxu0
    %v540 = vsel %vm492, %v491, 0
    %v543 = vsel %vm492, %v358, 0
    %545 = vmatprep.subr.bf16.mxu0 0
    %546 = vmatpush1.bf16.xpose.msra.mxu0 0
    %547 = vmatprep.subr.bf16.mxu0 0
    %548 = vmatpush1.bf16.xpose.msra.mxu0 0
    %549 = vmatprep.subr.bf16.mxu0 0
    %550 = vmatpush1.bf16.xpose.msra.mxu0 0
    %551 = vmatprep.subr.bf16.mxu0 0
    %552 = vmatpush1.bf16.xpose.msra.mxu0 0
    %553 = vmatprep.subr.bf16.mxu0 0
    %554 = vmatpush1.bf16.xpose.msra.mxu0 0
    %555 = vmatprep.subr.bf16.mxu0 0
    %556 = vmatpush1.bf16.xpose.msra.mxu0 0
    %557 = vmatprep.subr.bf16.mxu0 0
    %558 = vmatpush1.bf16.xpose.msra.mxu0 0
    %559 = vmatprep.subr.bf16.mxu0 0
    %560 = vmatpush1.bf16.xpose.msra.mxu0 %v543
    %561 = vmatprep.subr.bf16.mxu0 0
    %562 = vmatpush2.bf16.xpose.msra.mxu0 0
    %563 = vmatprep.subr.bf16.mxu0 0
    %564 = vmatpush2.bf16.xpose.msra.mxu0 0
    %565 = vmatprep.subr.bf16.mxu0 0
    %566 = vmatpush2.bf16.xpose.msra.mxu0 0
    %567 = vmatprep.subr.bf16.mxu0 0
    %568 = vmatpush2.bf16.xpose.msra.mxu0 0
    %569 = vmatprep.subr.bf16.mxu0 0
    %570 = vmatpush2.bf16.xpose.msra.mxu0 0
    %571 = vmatprep.subr.bf16.mxu0 0
    %572 = vmatpush2.bf16.xpose.msra.mxu0 0
    %573 = vmatprep.subr.bf16.mxu0 0
    %574 = vmatpush2.bf16.xpose.msra.mxu0 0
    %575 = vmatprep.subr.bf16.mxu0 0
    %576 = vmatpush2.bf16.xpose.msra.mxu0 0
    %577 = vmatprep.mubr.bf16.mxu0 0
    %578 = vmatmul.mubr.bf16.gmra.mxu0 %v540
    %v579 = vpop.f32.mrf.mxu0
    %v580 = vadd.f32 0.0, %v579
    %v581 = vpop.f32.mrf.mxu0
    %v582 = vpop.f32.mrf.mxu0
    %v583 = vpop.f32.mrf.mxu0
    %584 = vdwg.mxu0
    %585 = vrot.lane.b32.xlu0 %v490, 96
    %v586 = vpop.permute.xlu0 %585
    %v588 = vsel %vm492, %v586, 0
    %590 = vmatprep.subr.bf16.mxu0 0
    %591 = vmatpush1.bf16.xpose.msra.mxu0 0
    %592 = vmatprep.subr.bf16.mxu0 0
    %593 = vmatpush1.bf16.xpose.msra.mxu0 0
    %594 = vmatprep.subr.bf16.mxu0 0
    %595 = vmatpush1.bf16.xpose.msra.mxu0 0
    %596 = vmatprep.subr.bf16.mxu0 0
    %597 = vmatpush1.bf16.xpose.msra.mxu0 0
    %598 = vmatprep.subr.bf16.mxu0 0
    %599 = vmatpush1.bf16.xpose.msra.mxu0 0
    %600 = vmatprep.subr.bf16.mxu0 0
    %601 = vmatpush1.bf16.xpose.msra.mxu0 0
    %602 = vmatprep.subr.bf16.mxu0 0
    %603 = vmatpush1.bf16.xpose.msra.mxu0 0
    %604 = vmatprep.subr.bf16.mxu0 0
    %605 = vmatpush1.bf16.xpose.msra.mxu0 %v588
    %606 = vmatprep.subr.bf16.mxu0 0
    %607 = vmatpush2.bf16.xpose.msra.mxu0 0
    %608 = vmatprep.subr.bf16.mxu0 0
    %609 = vmatpush2.bf16.xpose.msra.mxu0 0
    %610 = vmatprep.subr.bf16.mxu0 0
    %611 = vmatpush2.bf16.xpose.msra.mxu0 0
    %612 = vmatprep.subr.bf16.mxu0 0
    %613 = vmatpush2.bf16.xpose.msra.mxu0 0
    %614 = vmatprep.subr.bf16.mxu0 0
    %615 = vmatpush2.bf16.xpose.msra.mxu0 0
    %616 = vmatprep.subr.bf16.mxu0 0
    %617 = vmatpush2.bf16.xpose.msra.mxu0 0
    %618 = vmatprep.subr.bf16.mxu0 0
    %619 = vmatpush2.bf16.xpose.msra.mxu0 0
    %620 = vmatprep.subr.bf16.mxu0 0
    %621 = vmatpush2.bf16.xpose.msra.mxu0 0
    %622 = vmatprep.mubr.bf16.mxu0 0
    %623 = vmatmul.mubr.bf16.gmra.mxu0 %v494
    %v624 = vpop.f32.mrf.mxu0
    %v625 = vadd.f32 0.0, %v624
    %v626 = vpop.f32.mrf.mxu0
    %v627 = vpop.f32.mrf.mxu0
    %v628 = vpop.f32.mrf.mxu0
    %629 = vdwg.mxu0
    %630 = vrot.lane.b32.xlu0 %v491, 96
    %v631 = vpop.permute.xlu0 %630
    %v633 = vsel %vm492, %v631, 0
    %635 = vmatprep.subr.bf16.mxu0 0
    %636 = vmatpush1.bf16.xpose.msra.mxu0 0
    %637 = vmatprep.subr.bf16.mxu0 0
    %638 = vmatpush1.bf16.xpose.msra.mxu0 0
    %639 = vmatprep.subr.bf16.mxu0 0
    %640 = vmatpush1.bf16.xpose.msra.mxu0 0
    %641 = vmatprep.subr.bf16.mxu0 0
    %642 = vmatpush1.bf16.xpose.msra.mxu0 0
    %643 = vmatprep.subr.bf16.mxu0 0
    %644 = vmatpush1.bf16.xpose.msra.mxu0 0
    %645 = vmatprep.subr.bf16.mxu0 0
    %646 = vmatpush1.bf16.xpose.msra.mxu0 0
    %647 = vmatprep.subr.bf16.mxu0 0
    %648 = vmatpush1.bf16.xpose.msra.mxu0 0
    %649 = vmatprep.subr.bf16.mxu0 0
    %650 = vmatpush1.bf16.xpose.msra.mxu0 %v633
    %651 = vmatprep.subr.bf16.mxu0 0
    %652 = vmatpush2.bf16.xpose.msra.mxu0 0
    %653 = vmatprep.subr.bf16.mxu0 0
    %654 = vmatpush2.bf16.xpose.msra.mxu0 0
    %655 = vmatprep.subr.bf16.mxu0 0
    %656 = vmatpush2.bf16.xpose.msra.mxu0 0
    %657 = vmatprep.subr.bf16.mxu0 0
    %658 = vmatpush2.bf16.xpose.msra.mxu0 0
    %659 = vmatprep.subr.bf16.mxu0 0
    %660 = vmatpush2.bf16.xpose.msra.mxu0 0
    %661 = vmatprep.subr.bf16.mxu0 0
    %662 = vmatpush2.bf16.xpose.msra.mxu0 0
    %663 = vmatprep.subr.bf16.mxu0 0
    %664 = vmatpush2.bf16.xpose.msra.mxu0 0
    %665 = vmatprep.subr.bf16.mxu0 0
    %666 = vmatpush2.bf16.xpose.msra.mxu0 0
    %667 = vmatprep.mubr.bf16.mxu0 0
    %668 = vmatmul.mubr.bf16.gmra.mxu0 %v540
    %v669 = vpop.f32.mrf.mxu0
    %v670 = vadd.f32 0.0, %v669
    %v671 = vpop.f32.mrf.mxu0
    %v672 = vpop.f32.mrf.mxu0
    %v673 = vpop.f32.mrf.mxu0
    %674 = vdwg.mxu0
    %vm675 = vcmask 130048
    %v676 = vsel %vm675, %v534, -inf
    %677 = vmax.xlane.f32.xlu0 %v676
    %v678 = vpop.xlane.xlu0 %677
    %v679 = vsel %vm675, %v580, -inf
    %680 = vmax.xlane.f32.xlu0 %v679
    %v681 = vpop.xlane.xlu0 %680
    %v682 = vsel %vm492, %v625, -inf
    %683 = vmax.xlane.f32.xlu0 %v682
    %v684 = vpop.xlane.xlu0 %683
    %v685 = vsel %vm492, %v670, -inf
    %686 = vmax.xlane.f32.xlu0 %v685
    %v687 = vpop.xlane.xlu0 %686
    %v688 = vmax.f32 %v678, %v684
    %v689 = vmax.f32 %v681, %v687
    %v690 = vsub.f32 %v534, %v688
    %v691 = vsub.f32 %v580, %v689
    %v692 = vmul.f32 %v690, 1.442695
    %v693 = vpow.pop %v692
    %v694 = vmul.f32 %v691, 1.442695
    %v695 = vpow.pop %v694
    %v696 = vsub.f32 %v625, %v688
    %v697 = vsub.f32 %v670, %v689
    %v698 = vmul.f32 %v696, 1.442695
    %v699 = vpow.pop %v698
    %v700 = vmul.f32 %v697, 1.442695
    %v701 = vpow.pop %v700
    %v702 = vsel %vm675, %v693, 0.0
    %703 = vadd.xlane.f32.xlu0 %v702
    %v704 = vpop.xlane.xlu0 %703
    %v705 = vsel %vm675, %v695, 0.0
    %706 = vadd.xlane.f32.xlu0 %v705
    %v707 = vpop.xlane.xlu0 %706
    %v708 = vsel %vm492, %v699, 0.0
    %709 = vadd.xlane.f32.xlu0 %v708
    %v710 = vpop.xlane.xlu0 %709
    %v711 = vsel %vm492, %v701, 0.0
    %712 = vadd.xlane.f32.xlu0 %v711
    %v713 = vpop.xlane.xlu0 %712
    %v714 = vadd.f32 %v704, %v710
    %v715 = vadd.f32 %v707, %v713
    %v716 = vrcp.pop %v714
    %v717 = vrcp.pop %v715
    %v718 = vmul.f32 %v693, %v716
    %v719 = vmul.f32 %v695, %v717
    %v720 = vpack.c.bf16 %v718, %v718
    %v721 = vpack.c.bf16 %v719, %v719
    %v722 = vmul.f32 %v699, %v716
    %v723 = vmul.f32 %v701, %v717
    %v724 = vpack.c.bf16 %v722, %v722
    %v725 = vpack.c.bf16 %v723, %v723
    %726 = vrot.lane.b32.xlu0 %v490, 64
    %v727 = vpop.permute.xlu0 %726
    %v729 = vsel %vm492, %v724, 0
    %vm731 = vcmask 1043456
    %v733 = vsel %vm731, %v727, 0
    %735 = vmatprep.subr.bf16.mxu0 0
    %736 = vmatpush1.bf16.msra.mxu0 0
    %737 = vmatprep.subr.bf16.mxu0 0
    %738 = vmatpush1.bf16.msra.mxu0 0
    %739 = vmatprep.subr.bf16.mxu0 0
    %740 = vmatpush1.bf16.msra.mxu0 0
    %741 = vmatprep.subr.bf16.mxu0 0
    %742 = vmatpush1.bf16.msra.mxu0 0
    %743 = vmatprep.subr.bf16.mxu0 0
    %744 = vmatpush1.bf16.msra.mxu0 0
    %745 = vmatprep.subr.bf16.mxu0 0
    %746 = vmatpush1.bf16.msra.mxu0 0
    %747 = vmatprep.subr.bf16.mxu0 0
    %748 = vmatpush1.bf16.msra.mxu0 0
    %749 = vmatprep.subr.bf16.mxu0 0
    %750 = vmatpush1.bf16.msra.mxu0 %v733
    %751 = vmatprep.subr.bf16.mxu0 0
    %752 = vmatpush2.bf16.msra.mxu0 0
    %753 = vmatprep.subr.bf16.mxu0 0
    %754 = vmatpush2.bf16.msra.mxu0 0
    %755 = vmatprep.subr.bf16.mxu0 0
    %756 = vmatpush2.bf16.msra.mxu0 0
    %757 = vmatprep.subr.bf16.mxu0 0
    %758 = vmatpush2.bf16.msra.mxu0 0
    %759 = vmatprep.subr.bf16.mxu0 0
    %760 = vmatpush2.bf16.msra.mxu0 0
    %761 = vmatprep.subr.bf16.mxu0 0
    %762 = vmatpush2.bf16.msra.mxu0 0
    %763 = vmatprep.subr.bf16.mxu0 0
    %764 = vmatpush2.bf16.msra.mxu0 0
    %765 = vmatprep.subr.bf16.mxu0 0
    %766 = vmatpush2.bf16.msra.mxu0 0
    %767 = vmatprep.mubr.bf16.mxu0 0
    %768 = vmatmul.mubr.bf16.gmra.mxu0 %v729
    %v769 = vpop.f32.mrf.mxu0
    %v770 = vadd.f32 0.0, %v769
    %v771 = vpop.f32.mrf.mxu0
    %v772 = vpop.f32.mrf.mxu0
    %v773 = vpop.f32.mrf.mxu0
    %774 = vdwg.mxu0
    %775 = vrot.lane.b32.xlu0 %v491, 64
    %v776 = vpop.permute.xlu0 %775
    %v778 = vsel %vm492, %v725, 0
    %v781 = vsel %vm731, %v776, 0
    %783 = vmatprep.subr.bf16.mxu0 0
    %784 = vmatpush1.bf16.msra.mxu0 0
    %785 = vmatprep.subr.bf16.mxu0 0
    %786 = vmatpush1.bf16.msra.mxu0 0
    %787 = vmatprep.subr.bf16.mxu0 0
    %788 = vmatpush1.bf16.msra.mxu0 0
    %789 = vmatprep.subr.bf16.mxu0 0
    %790 = vmatpush1.bf16.msra.mxu0 0
    %791 = vmatprep.subr.bf16.mxu0 0
    %792 = vmatpush1.bf16.msra.mxu0 0
    %793 = vmatprep.subr.bf16.mxu0 0
    %794 = vmatpush1.bf16.msra.mxu0 0
    %795 = vmatprep.subr.bf16.mxu0 0
    %796 = vmatpush1.bf16.msra.mxu0 0
    %797 = vmatprep.subr.bf16.mxu0 0
    %798 = vmatpush1.bf16.msra.mxu0 %v781
    %799 = vmatprep.subr.bf16.mxu0 0
    %800 = vmatpush2.bf16.msra.mxu0 0
    %801 = vmatprep.subr.bf16.mxu0 0
    %802 = vmatpush2.bf16.msra.mxu0 0
    %803 = vmatprep.subr.bf16.mxu0 0
    %804 = vmatpush2.bf16.msra.mxu0 0
    %805 = vmatprep.subr.bf16.mxu0 0
    %806 = vmatpush2.bf16.msra.mxu0 0
    %807 = vmatprep.subr.bf16.mxu0 0
    %808 = vmatpush2.bf16.msra.mxu0 0
    %809 = vmatprep.subr.bf16.mxu0 0
    %810 = vmatpush2.bf16.msra.mxu0 0
    %811 = vmatprep.subr.bf16.mxu0 0
    %812 = vmatpush2.bf16.msra.mxu0 0
    %813 = vmatprep.subr.bf16.mxu0 0
    %814 = vmatpush2.bf16.msra.mxu0 0
    %815 = vmatprep.mubr.bf16.mxu0 0
    %816 = vmatmul.mubr.bf16.gmra.mxu0 %v778
    %v817 = vpop.f32.mrf.mxu0
    %v818 = vadd.f32 0.0, %v817
    %v819 = vpop.f32.mrf.mxu0
    %v820 = vpop.f32.mrf.mxu0
    %v821 = vpop.f32.mrf.mxu0
    %822 = vdwg.mxu0
    %v824 = vsel %vm675, %v720, 0
    %826 = vmatprep.subr.bf16.mxu0 0
    %827 = vmatpush1.bf16.msra.mxu0 0
    %828 = vmatprep.subr.bf16.mxu0 0
    %829 = vmatpush1.bf16.msra.mxu0 0
    %830 = vmatprep.subr.bf16.mxu0 0
    %831 = vmatpush1.bf16.msra.mxu0 0
    %832 = vmatprep.subr.bf16.mxu0 0
    %833 = vmatpush1.bf16.msra.mxu0 0
    %834 = vmatprep.subr.bf16.mxu0 0
    %835 = vmatpush1.bf16.msra.mxu0 0
    %836 = vmatprep.subr.bf16.mxu0 0
    %837 = vmatpush1.bf16.msra.mxu0 0
    %838 = vmatprep.subr.bf16.mxu0 0
    %839 = vmatpush1.bf16.msra.mxu0 0
    %840 = vmatprep.subr.bf16.mxu0 0
    %841 = vmatpush1.bf16.msra.mxu0 %v424
    %842 = vmatprep.subr.bf16.mxu0 0
    %843 = vmatpush2.bf16.msra.mxu0 0
    %844 = vmatprep.subr.bf16.mxu0 0
    %845 = vmatpush2.bf16.msra.mxu0 0
    %846 = vmatprep.subr.bf16.mxu0 0
    %847 = vmatpush2.bf16.msra.mxu0 0
    %848 = vmatprep.subr.bf16.mxu0 0
    %849 = vmatpush2.bf16.msra.mxu0 0
    %850 = vmatprep.subr.bf16.mxu0 0
    %851 = vmatpush2.bf16.msra.mxu0 0
    %852 = vmatprep.subr.bf16.mxu0 0
    %853 = vmatpush2.bf16.msra.mxu0 0
    %854 = vmatprep.subr.bf16.mxu0 0
    %855 = vmatpush2.bf16.msra.mxu0 0
    %856 = vmatprep.subr.bf16.mxu0 0
    %857 = vmatpush2.bf16.msra.mxu0 0
    %858 = vmatprep.mubr.bf16.mxu0 0
    %859 = vmatmul.mubr.bf16.gmra.mxu0 %v824
    %v860 = vpop.f32.mrf.mxu0
    %v861 = vadd.f32 %v770, %v860
    %v862 = vpop.f32.mrf.mxu0
    %v863 = vpop.f32.mrf.mxu0
    %v864 = vpop.f32.mrf.mxu0
    %865 = vdwg.mxu0
    %v867 = vsel %vm675, %v721, 0
    %869 = vmatprep.subr.bf16.mxu0 0
    %870 = vmatpush1.bf16.msra.mxu0 0
    %871 = vmatprep.subr.bf16.mxu0 0
    %872 = vmatpush1.bf16.msra.mxu0 0
    %873 = vmatprep.subr.bf16.mxu0 0
    %874 = vmatpush1.bf16.msra.mxu0 0
    %875 = vmatprep.subr.bf16.mxu0 0
    %876 = vmatpush1.bf16.msra.mxu0 0
    %877 = vmatprep.subr.bf16.mxu0 0
    %878 = vmatpush1.bf16.msra.mxu0 0
    %879 = vmatprep.subr.bf16.mxu0 0
    %880 = vmatpush1.bf16.msra.mxu0 0
    %881 = vmatprep.subr.bf16.mxu0 0
    %882 = vmatpush1.bf16.msra.mxu0 0
    %883 = vmatprep.subr.bf16.mxu0 0
    %884 = vmatpush1.bf16.msra.mxu0 %v425
    %885 = vmatprep.subr.bf16.mxu0 0
    %886 = vmatpush2.bf16.msra.mxu0 0
    %887 = vmatprep.subr.bf16.mxu0 0
    %888 = vmatpush2.bf16.msra.mxu0 0
    %889 = vmatprep.subr.bf16.mxu0 0
    %890 = vmatpush2.bf16.msra.mxu0 0
    %891 = vmatprep.subr.bf16.mxu0 0
    %892 = vmatpush2.bf16.msra.mxu0 0
    %893 = vmatprep.subr.bf16.mxu0 0
    %894 = vmatpush2.bf16.msra.mxu0 0
    %895 = vmatprep.subr.bf16.mxu0 0
    %896 = vmatpush2.bf16.msra.mxu0 0
    %897 = vmatprep.subr.bf16.mxu0 0
    %898 = vmatpush2.bf16.msra.mxu0 0
    %899 = vmatprep.subr.bf16.mxu0 0
    %900 = vmatpush2.bf16.msra.mxu0 0
    %901 = vmatprep.mubr.bf16.mxu0 0
    %902 = vmatmul.mubr.bf16.gmra.mxu0 %v867
    %v903 = vpop.f32.mrf.mxu0
    %v904 = vadd.f32 %v818, %v903
    %v905 = vpop.f32.mrf.mxu0
    %v906 = vpop.f32.mrf.mxu0
    %v907 = vpop.f32.mrf.mxu0
    %908 = vdwg.mxu0
    %v909 = vpack.c.bf16 %v861, %v861
    %v910 = vpack.c.bf16 %v904, %v904
    %vm911 = vcmask 60416
    %912 = vst.msk [vmem:[#allocation2] sm:$0xf] %vm911, %v909
    %913 = vst.msk [vmem:[#allocation2 + $0x4] sm:$0xf] %vm911, %v910
    %914 = vrot.lane.b32.xlu0 %v490, 120
    %v915 = vpop.permute.xlu0 %914
    %917 = vrot.lane.b32.xlu0 %v357, 120
    %v918 = vpop.permute.xlu0 %917
    %v920 = vsel %vm492, %v915, 0
    %v923 = vsel %vm492, %v918, 0
    %925 = vmatprep.subr.bf16.mxu0 0
    %926 = vmatpush1.bf16.xpose.msra.mxu0 0
    %927 = vmatprep.subr.bf16.mxu0 0
    %928 = vmatpush1.bf16.xpose.msra.mxu0 0
    %929 = vmatprep.subr.bf16.mxu0 0
    %930 = vmatpush1.bf16.xpose.msra.mxu0 0
    %931 = vmatprep.subr.bf16.mxu0 0
    %932 = vmatpush1.bf16.xpose.msra.mxu0 0
    %933 = vmatprep.subr.bf16.mxu0 0
    %934 = vmatpush1.bf16.xpose.msra.mxu0 0
    %935 = vmatprep.subr.bf16.mxu0 0
    %936 = vmatpush1.bf16.xpose.msra.mxu0 0
    %937 = vmatprep.subr.bf16.mxu0 0
    %938 = vmatpush1.bf16.xpose.msra.mxu0 0
    %939 = vmatprep.subr.bf16.mxu0 0
    %940 = vmatpush1.bf16.xpose.msra.mxu0 %v923
    %941 = vmatprep.subr.bf16.mxu0 0
    %942 = vmatpush2.bf16.xpose.msra.mxu0 0
    %943 = vmatprep.subr.bf16.mxu0 0
    %944 = vmatpush2.bf16.xpose.msra.mxu0 0
    %945 = vmatprep.subr.bf16.mxu0 0
    %946 = vmatpush2.bf16.xpose.msra.mxu0 0
    %947 = vmatprep.subr.bf16.mxu0 0
    %948 = vmatpush2.bf16.xpose.msra.mxu0 0
    %949 = vmatprep.subr.bf16.mxu0 0
    %950 = vmatpush2.bf16.xpose.msra.mxu0 0
    %951 = vmatprep.subr.bf16.mxu0 0
    %952 = vmatpush2.bf16.xpose.msra.mxu0 0
    %953 = vmatprep.subr.bf16.mxu0 0
    %954 = vmatpush2.bf16.xpose.msra.mxu0 0
    %955 = vmatprep.subr.bf16.mxu0 0
    %956 = vmatpush2.bf16.xpose.msra.mxu0 0
    %957 = vmatprep.mubr.bf16.mxu0 0
    %958 = vmatmul.mubr.bf16.gmra.mxu0 %v920
    %v959 = vpop.f32.mrf.mxu0
    %v960 = vadd.f32 0.0, %v959
    %v961 = vpop.f32.mrf.mxu0
    %v962 = vpop.f32.mrf.mxu0
    %v963 = vpop.f32.mrf.mxu0
    %964 = vdwg.mxu0
    %965 = vrot.lane.b32.xlu0 %v491, 120
    %v966 = vpop.permute.xlu0 %965
    %968 = vrot.lane.b32.xlu0 %v358, 120
    %v969 = vpop.permute.xlu0 %968
    %v971 = vsel %vm492, %v966, 0
    %v974 = vsel %vm492, %v969, 0
    %976 = vmatprep.subr.bf16.mxu0 0
    %977 = vmatpush1.bf16.xpose.msra.mxu0 0
    %978 = vmatprep.subr.bf16.mxu0 0
    %979 = vmatpush1.bf16.xpose.msra.mxu0 0
    %980 = vmatprep.subr.bf16.mxu0 0
    %981 = vmatpush1.bf16.xpose.msra.mxu0 0
    %982 = vmatprep.subr.bf16.mxu0 0
    %983 = vmatpush1.bf16.xpose.msra.mxu0 0
    %984 = vmatprep.subr.bf16.mxu0 0
    %985 = vmatpush1.bf16.xpose.msra.mxu0 0
    %986 = vmatprep.subr.bf16.mxu0 0
    %987 = vmatpush1.bf16.xpose.msra.mxu0 0
    %988 = vmatprep.subr.bf16.mxu0 0
    %989 = vmatpush1.bf16.xpose.msra.mxu0 0
    %990 = vmatprep.subr.bf16.mxu0 0
    %991 = vmatpush1.bf16.xpose.msra.mxu0 %v974
    %992 = vmatprep.subr.bf16.mxu0 0
    %993 = vmatpush2.bf16.xpose.msra.mxu0 0
    %994 = vmatprep.subr.bf16.mxu0 0
    %995 = vmatpush2.bf16.xpose.msra.mxu0 0
    %996 = vmatprep.subr.bf16.mxu0 0
    %997 = vmatpush2.bf16.xpose.msra.mxu0 0
    %998 = vmatprep.subr.bf16.mxu0 0
    %999 = vmatpush2.bf16.xpose.msra.mxu0 0
    %1000 = vmatprep.subr.bf16.mxu0 0
    %1001 = vmatpush2.bf16.xpose.msra.mxu0 0
    %1002 = vmatprep.subr.bf16.mxu0 0
    %1003 = vmatpush2.bf16.xpose.msra.mxu0 0
    %1004 = vmatprep.subr.bf16.mxu0 0
    %1005 = vmatpush2.bf16.xpose.msra.mxu0 0
    %1006 = vmatprep.subr.bf16.mxu0 0
    %1007 = vmatpush2.bf16.xpose.msra.mxu0 0
    %1008 = vmatprep.mubr.bf16.mxu0 0
    %1009 = vmatmul.mubr.bf16.gmra.mxu0 %v971
    %v1010 = vpop.f32.mrf.mxu0
    %v1011 = vadd.f32 0.0, %v1010
    %v1012 = vpop.f32.mrf.mxu0
    %v1013 = vpop.f32.mrf.mxu0
    %v1014 = vpop.f32.mrf.mxu0
    %1015 = vdwg.mxu0
    %1016 = vrot.lane.b32.xlu0 %v490, 88
    %v1017 = vpop.permute.xlu0 %1016
    %v1019 = vsel %vm492, %v1017, 0
    %1021 = vmatprep.subr.bf16.mxu0 0
    %1022 = vmatpush1.bf16.xpose.msra.mxu0 0
    %1023 = vmatprep.subr.bf16.mxu0 0
    %1024 = vmatpush1.bf16.xpose.msra.mxu0 0
    %1025 = vmatprep.subr.bf16.mxu0 0
    %1026 = vmatpush1.bf16.xpose.msra.mxu0 0
    %1027 = vmatprep.subr.bf16.mxu0 0
    %1028 = vmatpush1.bf16.xpose.msra.mxu0 0
    %1029 = vmatprep.subr.bf16.mxu0 0
    %1030 = vmatpush1.bf16.xpose.msra.mxu0 0
    %1031 = vmatprep.subr.bf16.mxu0 0
    %1032 = vmatpush1.bf16.xpose.msra.mxu0 0
    %1033 = vmatprep.subr.bf16.mxu0 0
    %1034 = vmatpush1.bf16.xpose.msra.mxu0 0
    %1035 = vmatprep.subr.bf16.mxu0 0
    %1036 = vmatpush1.bf16.xpose.msra.mxu0 %v1019
    %1037 = vmatprep.subr.bf16.mxu0 0
    %1038 = vmatpush2.bf16.xpose.msra.mxu0 0
    %1039 = vmatprep.subr.bf16.mxu0 0
    %1040 = vmatpush2.bf16.xpose.msra.mxu0 0
    %1041 = vmatprep.subr.bf16.mxu0 0
    %1042 = vmatpush2.bf16.xpose.msra.mxu0 0
    %1043 = vmatprep.subr.bf16.mxu0 0
    %1044 = vmatpush2.bf16.xpose.msra.mxu0 0
    %1045 = vmatprep.subr.bf16.mxu0 0
    %1046 = vmatpush2.bf16.xpose.msra.mxu0 0
    %1047 = vmatprep.subr.bf16.mxu0 0
    %1048 = vmatpush2.bf16.xpose.msra.mxu0 0
    %1049 = vmatprep.subr.bf16.mxu0 0
    %1050 = vmatpush2.bf16.xpose.msra.mxu0 0
    %1051 = vmatprep.subr.bf16.mxu0 0
    %1052 = vmatpush2.bf16.xpose.msra.mxu0 0
    %1053 = vmatprep.mubr.bf16.mxu0 0
    %1054 = vmatmul.mubr.bf16.gmra.mxu0 %v920
    %v1055 = vpop.f32.mrf.mxu0
    %v1056 = vadd.f32 0.0, %v1055
    %v1057 = vpop.f32.mrf.mxu0
    %v1058 = vpop.f32.mrf.mxu0
    %v1059 = vpop.f32.mrf.mxu0
    %1060 = vdwg.mxu0
    %1061 = vrot.lane.b32.xlu0 %v491, 88
    %v1062 = vpop.permute.xlu0 %1061
    %v1064 = vsel %vm492, %v1062, 0
    %1066 = vmatprep.subr.bf16.mxu0 0
    %1067 = vmatpush1.bf16.xpose.msra.mxu0 0
    %1068 = vmatprep.subr.bf16.mxu0 0
    %1069 = vmatpush1.bf16.xpose.msra.mxu0 0
    %1070 = vmatprep.subr.bf16.mxu0 0
    %1071 = vmatpush1.bf16.xpose.msra.mxu0 0
    %1072 = vmatprep.subr.bf16.mxu0 0
    %1073 = vmatpush1.bf16.xpose.msra.mxu0 0
    %1074 = vmatprep.subr.bf16.mxu0 0
    %1075 = vmatpush1.bf16.xpose.msra.mxu0 0
    %1076 = vmatprep.subr.bf16.mxu0 0
    %1077 = vmatpush1.bf16.xpose.msra.mxu0 0
    %1078 = vmatprep.subr.bf16.mxu0 0
    %1079 = vmatpush1.bf16.xpose.msra.mxu0 0
    %1080 = vmatprep.subr.bf16.mxu0 0
    %1081 = vmatpush1.bf16.xpose.msra.mxu0 %v1064
    %1082 = vmatprep.subr.bf16.mxu0 0
    %1083 = vmatpush2.bf16.xpose.msra.mxu0 0
    %1084 = vmatprep.subr.bf16.mxu0 0
    %1085 = vmatpush2.bf16.xpose.msra.mxu0 0
    %1086 = vmatprep.subr.bf16.mxu0 0
    %1087 = vmatpush2.bf16.xpose.msra.mxu0 0
    %1088 = vmatprep.subr.bf16.mxu0 0
    %1089 = vmatpush2.bf16.xpose.msra.mxu0 0
    %1090 = vmatprep.subr.bf16.mxu0 0
    %1091 = vmatpush2.bf16.xpose.msra.mxu0 0
    %1092 = vmatprep.subr.bf16.mxu0 0
    %1093 = vmatpush2.bf16.xpose.msra.mxu0 0
    %1094 = vmatprep.subr.bf16.mxu0 0
    %1095 = vmatpush2.bf16.xpose.msra.mxu0 0
    %1096 = vmatprep.subr.bf16.mxu0 0
    %1097 = vmatpush2.bf16.xpose.msra.mxu0 0
    %1098 = vmatprep.mubr.bf16.mxu0 0
    %1099 = vmatmul.mubr.bf16.gmra.mxu0 %v971
    %v1100 = vpop.f32.mrf.mxu0
    %v1101 = vadd.f32 0.0, %v1100
    %v1102 = vpop.f32.mrf.mxu0
    %v1103 = vpop.f32.mrf.mxu0
    %v1104 = vpop.f32.mrf.mxu0
    %1105 = vdwg.mxu0
    %v1106 = vsel %vm675, %v960, -inf
    %1107 = vmax.xlane.f32.xlu0 %v1106
    %v1108 = vpop.xlane.xlu0 %1107
    %v1109 = vsel %vm675, %v1011, -inf
    %1110 = vmax.xlane.f32.xlu0 %v1109
    %v1111 = vpop.xlane.xlu0 %1110
    %v1112 = vsel %vm492, %v1056, -inf
    %1113 = vmax.xlane.f32.xlu0 %v1112
    %v1114 = vpop.xlane.xlu0 %1113
    %v1115 = vsel %vm492, %v1101, -inf
    %1116 = vmax.xlane.f32.xlu0 %v1115
    %v1117 = vpop.xlane.xlu0 %1116
    %v1118 = vmax.f32 %v1108, %v1114
    %v1119 = vmax.f32 %v1111, %v1117
    %v1120 = vsub.f32 %v960, %v1118
    %v1121 = vsub.f32 %v1011, %v1119
    %v1122 = vmul.f32 %v1120, 1.442695
    %v1123 = vpow.pop %v1122
    %v1124 = vmul.f32 %v1121, 1.442695
    %v1125 = vpow.pop %v1124
    %v1126 = vsub.f32 %v1056, %v1118
    %v1127 = vsub.f32 %v1101, %v1119
    %v1128 = vmul.f32 %v1126, 1.442695
    %v1129 = vpow.pop %v1128
    %v1130 = vmul.f32 %v1127, 1.442695
    %v1131 = vpow.pop %v1130
    %v1132 = vsel %vm675, %v1123, 0.0
    %1133 = vadd.xlane.f32.xlu0 %v1132
    %v1134 = vpop.xlane.xlu0 %1133
    %v1135 = vsel %vm675, %v1125, 0.0
    %1136 = vadd.xlane.f32.xlu0 %v1135
    %v1137 = vpop.xlane.xlu0 %1136
    %v1138 = vsel %vm492, %v1129, 0.0
    %1139 = vadd.xlane.f32.xlu0 %v1138
    %v1140 = vpop.xlane.xlu0 %1139
    %v1141 = vsel %vm492, %v1131, 0.0
    %1142 = vadd.xlane.f32.xlu0 %v1141
    %v1143 = vpop.xlane.xlu0 %1142
    %v1144 = vadd.f32 %v1134, %v1140
    %v1145 = vadd.f32 %v1137, %v1143
    %v1146 = vrcp.pop %v1144
    %v1147 = vrcp.pop %v1145
    %v1148 = vmul.f32 %v1123, %v1146
    %v1149 = vmul.f32 %v1125, %v1147
    %v1150 = vpack.c.bf16 %v1148, %v1148
    %v1151 = vpack.c.bf16 %v1149, %v1149
    %v1152 = vmul.f32 %v1129, %v1146
    %v1153 = vmul.f32 %v1131, %v1147
    %v1154 = vpack.c.bf16 %v1152, %v1152
    %v1155 = vpack.c.bf16 %v1153, %v1153
    %1156 = vrot.lane.b32.xlu0 %v490, 56
    %v1157 = vpop.permute.xlu0 %1156
    %v1159 = vsel %vm492, %v1154, 0
    %v1162 = vsel %vm731, %v1157, 0
    %1164 = vmatprep.subr.bf16.mxu0 0
    %1165 = vmatpush1.bf16.msra.mxu0 0
    %1166 = vmatprep.subr.bf16.mxu0 0
    %1167 = vmatpush1.bf16.msra.mxu0 0
    %1168 = vmatprep.subr.bf16.mxu0 0
    %1169 = vmatpush1.bf16.msra.mxu0 0
    %1170 = vmatprep.subr.bf16.mxu0 0
    %1171 = vmatpush1.bf16.msra.mxu0 0
    %1172 = vmatprep.subr.bf16.mxu0 0
    %1173 = vmatpush1.bf16.msra.mxu0 0
    %1174 = vmatprep.subr.bf16.mxu0 0
    %1175 = vmatpush1.bf16.msra.mxu0 0
    %1176 = vmatprep.subr.bf16.mxu0 0
    %1177 = vmatpush1.bf16.msra.mxu0 0
    %1178 = vmatprep.subr.bf16.mxu0 0
    %1179 = vmatpush1.bf16.msra.mxu0 %v1162
    %1180 = vmatprep.subr.bf16.mxu0 0
    %1181 = vmatpush2.bf16.msra.mxu0 0
    %1182 = vmatprep.subr.bf16.mxu0 0
    %1183 = vmatpush2.bf16.msra.mxu0 0
    %1184 = vmatprep.subr.bf16.mxu0 0
    %1185 = vmatpush2.bf16.msra.mxu0 0
    %1186 = vmatprep.subr.bf16.mxu0 0
    %1187 = vmatpush2.bf16.msra.mxu0 0
    %1188 = vmatprep.subr.bf16.mxu0 0
    %1189 = vmatpush2.bf16.msra.mxu0 0
    %1190 = vmatprep.subr.bf16.mxu0 0
    %1191 = vmatpush2.bf16.msra.mxu0 0
    %1192 = vmatprep.subr.bf16.mxu0 0
    %1193 = vmatpush2.bf16.msra.mxu0 0
    %1194 = vmatprep.subr.bf16.mxu0 0
    %1195 = vmatpush2.bf16.msra.mxu0 0
    %1196 = vmatprep.mubr.bf16.mxu0 0
    %1197 = vmatmul.mubr.bf16.gmra.mxu0 %v1159
    %v1198 = vpop.f32.mrf.mxu0
    %v1199 = vadd.f32 0.0, %v1198
    %v1200 = vpop.f32.mrf.mxu0
    %v1201 = vpop.f32.mrf.mxu0
    %v1202 = vpop.f32.mrf.mxu0
    %1203 = vdwg.mxu0
    %1204 = vrot.lane.b32.xlu0 %v491, 56
    %v1205 = vpop.permute.xlu0 %1204
    %v1207 = vsel %vm492, %v1155, 0
    %v1210 = vsel %vm731, %v1205, 0
    %1212 = vmatprep.subr.bf16.mxu0 0
    %1213 = vmatpush1.bf16.msra.mxu0 0
    %1214 = vmatprep.subr.bf16.mxu0 0
    %1215 = vmatpush1.bf16.msra.mxu0 0
    %1216 = vmatprep.subr.bf16.mxu0 0
    %1217 = vmatpush1.bf16.msra.mxu0 0
    %1218 = vmatprep.subr.bf16.mxu0 0
    %1219 = vmatpush1.bf16.msra.mxu0 0
    %1220 = vmatprep.subr.bf16.mxu0 0
    %1221 = vmatpush1.bf16.msra.mxu0 0
    %1222 = vmatprep.subr.bf16.mxu0 0
    %1223 = vmatpush1.bf16.msra.mxu0 0
    %1224 = vmatprep.subr.bf16.mxu0 0
    %1225 = vmatpush1.bf16.msra.mxu0 0
    %1226 = vmatprep.subr.bf16.mxu0 0
    %1227 = vmatpush1.bf16.msra.mxu0 %v1210
    %1228 = vmatprep.subr.bf16.mxu0 0
    %1229 = vmatpush2.bf16.msra.mxu0 0
    %1230 = vmatprep.subr.bf16.mxu0 0
    %1231 = vmatpush2.bf16.msra.mxu0 0
    %1232 = vmatprep.subr.bf16.mxu0 0
    %1233 = vmatpush2.bf16.msra.mxu0 0
    %1234 = vmatprep.subr.bf16.mxu0 0
    %1235 = vmatpush2.bf16.msra.mxu0 0
    %1236 = vmatprep.subr.bf16.mxu0 0
    %1237 = vmatpush2.bf16.msra.mxu0 0
    %1238 = vmatprep.subr.bf16.mxu0 0
    %1239 = vmatpush2.bf16.msra.mxu0 0
    %1240 = vmatprep.subr.bf16.mxu0 0
    %1241 = vmatpush2.bf16.msra.mxu0 0
    %1242 = vmatprep.subr.bf16.mxu0 0
    %1243 = vmatpush2.bf16.msra.mxu0 0
    %1244 = vmatprep.mubr.bf16.mxu0 0
    %1245 = vmatmul.mubr.bf16.gmra.mxu0 %v1207
    %v1246 = vpop.f32.mrf.mxu0
    %v1247 = vadd.f32 0.0, %v1246
    %v1248 = vpop.f32.mrf.mxu0
    %v1249 = vpop.f32.mrf.mxu0
    %v1250 = vpop.f32.mrf.mxu0
    %1251 = vdwg.mxu0
    %1253 = vrot.lane.b32.xlu0 %v424, 120
    %v1254 = vpop.permute.xlu0 %1253
    %v1257 = vsel %vm675, %v1150, 0
    %1259 = vmatprep.subr.bf16.mxu0 0
    %1260 = vmatpush1.bf16.msra.mxu0 0
    %1261 = vmatprep.subr.bf16.mxu0 0
    %1262 = vmatpush1.bf16.msra.mxu0 0
    %1263 = vmatprep.subr.bf16.mxu0 0
    %1264 = vmatpush1.bf16.msra.mxu0 0
    %1265 = vmatprep.subr.bf16.mxu0 0
    %1266 = vmatpush1.bf16.msra.mxu0 0
    %1267 = vmatprep.subr.bf16.mxu0 0
    %1268 = vmatpush1.bf16.msra.mxu0 0
    %1269 = vmatprep.subr.bf16.mxu0 0
    %1270 = vmatpush1.bf16.msra.mxu0 0
    %1271 = vmatprep.subr.bf16.mxu0 0
    %1272 = vmatpush1.bf16.msra.mxu0 0
    %1273 = vmatprep.subr.bf16.mxu0 0
    %1274 = vmatpush1.bf16.msra.mxu0 %v1254
    %1275 = vmatprep.subr.bf16.mxu0 0
    %1276 = vmatpush2.bf16.msra.mxu0 0
    %1277 = vmatprep.subr.bf16.mxu0 0
    %1278 = vmatpush2.bf16.msra.mxu0 0
    %1279 = vmatprep.subr.bf16.mxu0 0
    %1280 = vmatpush2.bf16.msra.mxu0 0
    %1281 = vmatprep.subr.bf16.mxu0 0
    %1282 = vmatpush2.bf16.msra.mxu0 0
    %1283 = vmatprep.subr.bf16.mxu0 0
    %1284 = vmatpush2.bf16.msra.mxu0 0
    %1285 = vmatprep.subr.bf16.mxu0 0
    %1286 = vmatpush2.bf16.msra.mxu0 0
    %1287 = vmatprep.subr.bf16.mxu0 0
    %1288 = vmatpush2.bf16.msra.mxu0 0
    %1289 = vmatprep.subr.bf16.mxu0 0
    %1290 = vmatpush2.bf16.msra.mxu0 0
    %1291 = vmatprep.mubr.bf16.mxu0 0
    %1292 = vmatmul.mubr.bf16.gmra.mxu0 %v1257
    %v1293 = vpop.f32.mrf.mxu0
    %v1294 = vadd.f32 %v1199, %v1293
    %v1295 = vpop.f32.mrf.mxu0
    %v1296 = vpop.f32.mrf.mxu0
    %v1297 = vpop.f32.mrf.mxu0
    %1298 = vdwg.mxu0
    %1300 = vrot.lane.b32.xlu0 %v425, 120
    %v1301 = vpop.permute.xlu0 %1300
    %v1304 = vsel %vm675, %v1151, 0
    %1306 = vmatprep.subr.bf16.mxu0 0
    %1307 = vmatpush1.bf16.msra.mxu0 0
    %1308 = vmatprep.subr.bf16.mxu0 0
    %1309 = vmatpush1.bf16.msra.mxu0 0
    %1310 = vmatprep.subr.bf16.mxu0 0
    %1311 = vmatpush1.bf16.msra.mxu0 0
    %1312 = vmatprep.subr.bf16.mxu0 0
    %1313 = vmatpush1.bf16.msra.mxu0 0
    %1314 = vmatprep.subr.bf16.mxu0 0
    %1315 = vmatpush1.bf16.msra.mxu0 0
    %1316 = vmatprep.subr.bf16.mxu0 0
    %1317 = vmatpush1.bf16.msra.mxu0 0
    %1318 = vmatprep.subr.bf16.mxu0 0
    %1319 = vmatpush1.bf16.msra.mxu0 0
    %1320 = vmatprep.subr.bf16.mxu0 0
    %1321 = vmatpush1.bf16.msra.mxu0 %v1301
    %1322 = vmatprep.subr.bf16.mxu0 0
    %1323 = vmatpush2.bf16.msra.mxu0 0
    %1324 = vmatprep.subr.bf16.mxu0 0
    %1325 = vmatpush2.bf16.msra.mxu0 0
    %1326 = vmatprep.subr.bf16.mxu0 0
    %1327 = vmatpush2.bf16.msra.mxu0 0
    %1328 = vmatprep.subr.bf16.mxu0 0
    %1329 = vmatpush2.bf16.msra.mxu0 0
    %1330 = vmatprep.subr.bf16.mxu0 0
    %1331 = vmatpush2.bf16.msra.mxu0 0
    %1332 = vmatprep.subr.bf16.mxu0 0
    %1333 = vmatpush2.bf16.msra.mxu0 0
    %1334 = vmatprep.subr.bf16.mxu0 0
    %1335 = vmatpush2.bf16.msra.mxu0 0
    %1336 = vmatprep.subr.bf16.mxu0 0
    %1337 = vmatpush2.bf16.msra.mxu0 0
    %1338 = vmatprep.mubr.bf16.mxu0 0
    %1339 = vmatmul.mubr.bf16.gmra.mxu0 %v1304
    %v1340 = vpop.f32.mrf.mxu0
    %v1341 = vadd.f32 %v1247, %v1340
    %v1342 = vpop.f32.mrf.mxu0
    %v1343 = vpop.f32.mrf.mxu0
    %v1344 = vpop.f32.mrf.mxu0
    %1345 = vdwg.mxu0
    %v1346 = vpack.c.bf16 %v1294, %v1294
    %v1347 = vpack.c.bf16 %v1341, %v1341
    %v1350 = vunpack.c.l.b16 %v1346
    %v1351 = vunpack.c.l.b16 %v1347
    %v1352 = vpack.c.b16 %v1350, %v1350
    %v1353 = vpack.c.b16 %v1351, %v1351
    %1354 = vrot.lane.b32.xlu0 %v1352, 8
    %v1355 = vpop.permute.xlu0 %1354
    %1356 = vrot.lane.b32.xlu0 %v1353, 8
    %v1357 = vpop.permute.xlu0 %1356
    %vm1360 = vcmask 126016
    %1361 = vst.msk [vmem:[#allocation2] sm:$0xf] %vm1360, %v1355
    %1362 = vst.msk [vmem:[#allocation2 + $0x4] sm:$0xf] %vm1360, %v1357
    %1363 = vrot.lane.b32.xlu0 %v490, 112
    %v1364 = vpop.permute.xlu0 %1363
    %1365 = vrot.lane.b32.xlu0 %v357, 112
    %v1366 = vpop.permute.xlu0 %1365
    %v1368 = vsel %vm492, %v1364, 0
    %v1371 = vsel %vm492, %v1366, 0
    %1373 = vmatprep.subr.bf16.mxu0 0
    %1374 = vmatpush1.bf16.xpose.msra.mxu0 0
    %1375 = vmatprep.subr.bf16.mxu0 0
    %1376 = vmatpush1.bf16.xpose.msra.mxu0 0
    %1377 = vmatprep.subr.bf16.mxu0 0
    %1378 = vmatpush1.bf16.xpose.msra.mxu0 0
    %1379 = vmatprep.subr.bf16.mxu0 0
    %1380 = vmatpush1.bf16.xpose.msra.mxu0 0
    %1381 = vmatprep.subr.bf16.mxu0 0
    %1382 = vmatpush1.bf16.xpose.msra.mxu0 0
    %1383 = vmatprep.subr.bf16.mxu0 0
    %1384 = vmatpush1.bf16.xpose.msra.mxu0 0
    %1385 = vmatprep.subr.bf16.mxu0 0
    %1386 = vmatpush1.bf16.xpose.msra.mxu0 0
    %1387 = vmatprep.subr.bf16.mxu0 0
    %1388 = vmatpush1.bf16.xpose.msra.mxu0 %v1371
    %1389 = vmatprep.subr.bf16.mxu0 0
    %1390 = vmatpush2.bf16.xpose.msra.mxu0 0
    %1391 = vmatprep.subr.bf16.mxu0 0
    %1392 = vmatpush2.bf16.xpose.msra.mxu0 0
    %1393 = vmatprep.subr.bf16.mxu0 0
    %1394 = vmatpush2.bf16.xpose.msra.mxu0 0
    %1395 = vmatprep.subr.bf16.mxu0 0
    %1396 = vmatpush2.bf16.xpose.msra.mxu0 0
    %1397 = vmatprep.subr.bf16.mxu0 0
    %1398 = vmatpush2.bf16.xpose.msra.mxu0 0
    %1399 = vmatprep.subr.bf16.mxu0 0
    %1400 = vmatpush2.bf16.xpose.msra.mxu0 0
    %1401 = vmatprep.subr.bf16.mxu0 0
    %1402 = vmatpush2.bf16.xpose.msra.mxu0 0
    %1403 = vmatprep.subr.bf16.mxu0 0
    %1404 = vmatpush2.bf16.xpose.msra.mxu0 0
    %1405 = vmatprep.mubr.bf16.mxu0 0
    %1406 = vmatmul.mubr.bf16.gmra.mxu0 %v1368
    %v1407 = vpop.f32.mrf.mxu0
    %v1408 = vadd.f32 0.0, %v1407
    %v1409 = vpop.f32.mrf.mxu0
    %v1410 = vpop.f32.mrf.mxu0
    %v1411 = vpop.f32.mrf.mxu0
    %1412 = vdwg.mxu0
    %1413 = vrot.lane.b32.xlu0 %v491, 112
    %v1414 = vpop.permute.xlu0 %1413
    %1415 = vrot.lane.b32.xlu0 %v358, 112
    %v1416 = vpop.permute.xlu0 %1415
    %v1418 = vsel %vm492, %v1414, 0
    %v1421 = vsel %vm492, %v1416, 0
    %1423 = vmatprep.subr.bf16.mxu0 0
    %1424 = vmatpush1.bf16.xpose.msra.mxu0 0
    %1425 = vmatprep.subr.bf16.mxu0 0
    %1426 = vmatpush1.bf16.xpose.msra.mxu0 0
    %1427 = vmatprep.subr.bf16.mxu0 0
    %1428 = vmatpush1.bf16.xpose.msra.mxu0 0
    %1429 = vmatprep.subr.bf16.mxu0 0
    %1430 = vmatpush1.bf16.xpose.msra.mxu0 0
    %1431 = vmatprep.subr.bf16.mxu0 0
    %1432 = vmatpush1.bf16.xpose.msra.mxu0 0
    %1433 = vmatprep.subr.bf16.mxu0 0
    %1434 = vmatpush1.bf16.xpose.msra.mxu0 0
    %1435 = vmatprep.subr.bf16.mxu0 0
    %1436 = vmatpush1.bf16.xpose.msra.mxu0 0
    %1437 = vmatprep.subr.bf16.mxu0 0
    %1438 = vmatpush1.bf16.xpose.msra.mxu0 %v1421
    %1439 = vmatprep.subr.bf16.mxu0 0
    %1440 = vmatpush2.bf16.xpose.msra.mxu0 0
    %1441 = vmatprep.subr.bf16.mxu0 0
    %1442 = vmatpush2.bf16.xpose.msra.mxu0 0
    %1443 = vmatprep.subr.bf16.mxu0 0
    %1444 = vmatpush2.bf16.xpose.msra.mxu0 0
    %1445 = vmatprep.subr.bf16.mxu0 0
    %1446 = vmatpush2.bf16.xpose.msra.mxu0 0
    %1447 = vmatprep.subr.bf16.mxu0 0
    %1448 = vmatpush2.bf16.xpose.msra.mxu0 0
    %1449 = vmatprep.subr.bf16.mxu0 0
    %1450 = vmatpush2.bf16.xpose.msra.mxu0 0
    %1451 = vmatprep.subr.bf16.mxu0 0
    %1452 = vmatpush2.bf16.xpose.msra.mxu0 0
    %1453 = vmatprep.subr.bf16.mxu0 0
    %1454 = vmatpush2.bf16.xpose.msra.mxu0 0
    %1455 = vmatprep.mubr.bf16.mxu0 0
    %1456 = vmatmul.mubr.bf16.gmra.mxu0 %v1418
    %v1457 = vpop.f32.mrf.mxu0
    %v1458 = vadd.f32 0.0, %v1457
    %v1459 = vpop.f32.mrf.mxu0
    %v1460 = vpop.f32.mrf.mxu0
    %v1461 = vpop.f32.mrf.mxu0
    %1462 = vdwg.mxu0
    %1463 = vrot.lane.b32.xlu0 %v490, 80
    %v1464 = vpop.permute.xlu0 %1463
    %v1466 = vsel %vm492, %v1464, 0
    %1468 = vmatprep.subr.bf16.mxu0 0
    %1469 = vmatpush1.bf16.xpose.msra.mxu0 0
    %1470 = vmatprep.subr.bf16.mxu0 0
    %1471 = vmatpush1.bf16.xpose.msra.mxu0 0
    %1472 = vmatprep.subr.bf16.mxu0 0
    %1473 = vmatpush1.bf16.xpose.msra.mxu0 0
    %1474 = vmatprep.subr.bf16.mxu0 0
    %1475 = vmatpush1.bf16.xpose.msra.mxu0 0
    %1476 = vmatprep.subr.bf16.mxu0 0
    %1477 = vmatpush1.bf16.xpose.msra.mxu0 0
    %1478 = vmatprep.subr.bf16.mxu0 0
    %1479 = vmatpush1.bf16.xpose.msra.mxu0 0
    %1480 = vmatprep.subr.bf16.mxu0 0
    %1481 = vmatpush1.bf16.xpose.msra.mxu0 0
    %1482 = vmatprep.subr.bf16.mxu0 0
    %1483 = vmatpush1.bf16.xpose.msra.mxu0 %v1466
    %1484 = vmatprep.subr.bf16.mxu0 0
    %1485 = vmatpush2.bf16.xpose.msra.mxu0 0
    %1486 = vmatprep.subr.bf16.mxu0 0
    %1487 = vmatpush2.bf16.xpose.msra.mxu0 0
    %1488 = vmatprep.subr.bf16.mxu0 0
    %1489 = vmatpush2.bf16.xpose.msra.mxu0 0
    %1490 = vmatprep.subr.bf16.mxu0 0
    %1491 = vmatpush2.bf16.xpose.msra.mxu0 0
    %1492 = vmatprep.subr.bf16.mxu0 0
    %1493 = vmatpush2.bf16.xpose.msra.mxu0 0
    %1494 = vmatprep.subr.bf16.mxu0 0
    %1495 = vmatpush2.bf16.xpose.msra.mxu0 0
    %1496 = vmatprep.subr.bf16.mxu0 0
    %1497 = vmatpush2.bf16.xpose.msra.mxu0 0
    %1498 = vmatprep.subr.bf16.mxu0 0
    %1499 = vmatpush2.bf16.xpose.msra.mxu0 0
    %1500 = vmatprep.mubr.bf16.mxu0 0
    %1501 = vmatmul.mubr.bf16.gmra.mxu0 %v1368
    %v1502 = vpop.f32.mrf.mxu0
    %v1503 = vadd.f32 0.0, %v1502
    %v1504 = vpop.f32.mrf.mxu0
    %v1505 = vpop.f32.mrf.mxu0
    %v1506 = vpop.f32.mrf.mxu0
    %1507 = vdwg.mxu0
    %1508 = vrot.lane.b32.xlu0 %v491, 80
    %v1509 = vpop.permute.xlu0 %1508
    %v1511 = vsel %vm492, %v1509, 0
    %1513 = vmatprep.subr.bf16.mxu0 0
    %1514 = vmatpush1.bf16.xpose.msra.mxu0 0
    %1515 = vmatprep.subr.bf16.mxu0 0
    %1516 = vmatpush1.bf16.xpose.msra.mxu0 0
    %1517 = vmatprep.subr.bf16.mxu0 0
    %1518 = vmatpush1.bf16.xpose.msra.mxu0 0
    %1519 = vmatprep.subr.bf16.mxu0 0
    %1520 = vmatpush1.bf16.xpose.msra.mxu0 0
    %1521 = vmatprep.subr.bf16.mxu0 0
    %1522 = vmatpush1.bf16.xpose.msra.mxu0 0
    %1523 = vmatprep.subr.bf16.mxu0 0
    %1524 = vmatpush1.bf16.xpose.msra.mxu0 0
    %1525 = vmatprep.subr.bf16.mxu0 0
    %1526 = vmatpush1.bf16.xpose.msra.mxu0 0
    %1527 = vmatprep.subr.bf16.mxu0 0
    %1528 = vmatpush1.bf16.xpose.msra.mxu0 %v1511
    %1529 = vmatprep.subr.bf16.mxu0 0
    %1530 = vmatpush2.bf16.xpose.msra.mxu0 0
    %1531 = vmatprep.subr.bf16.mxu0 0
    %1532 = vmatpush2.bf16.xpose.msra.mxu0 0
    %1533 = vmatprep.subr.bf16.mxu0 0
    %1534 = vmatpush2.bf16.xpose.msra.mxu0 0
    %1535 = vmatprep.subr.bf16.mxu0 0
    %1536 = vmatpush2.bf16.xpose.msra.mxu0 0
    %1537 = vmatprep.subr.bf16.mxu0 0
    %1538 = vmatpush2.bf16.xpose.msra.mxu0 0
    %1539 = vmatprep.subr.bf16.mxu0 0
    %1540 = vmatpush2.bf16.xpose.msra.mxu0 0
    %1541 = vmatprep.subr.bf16.mxu0 0
    %1542 = vmatpush2.bf16.xpose.msra.mxu0 0
    %1543 = vmatprep.subr.bf16.mxu0 0
    %1544 = vmatpush2.bf16.xpose.msra.mxu0 0
    %1545 = vmatprep.mubr.bf16.mxu0 0
    %1546 = vmatmul.mubr.bf16.gmra.mxu0 %v1418
    %v1547 = vpop.f32.mrf.mxu0
    %v1548 = vadd.f32 0.0, %v1547
    %v1549 = vpop.f32.mrf.mxu0
    %v1550 = vpop.f32.mrf.mxu0
    %v1551 = vpop.f32.mrf.mxu0
    %1552 = vdwg.mxu0
    %v1553 = vsel %vm675, %v1408, -inf
    %1554 = vmax.xlane.f32.xlu0 %v1553
    %v1555 = vpop.xlane.xlu0 %1554
    %v1556 = vsel %vm675, %v1458, -inf
    %1557 = vmax.xlane.f32.xlu0 %v1556
    %v1558 = vpop.xlane.xlu0 %1557
    %v1559 = vsel %vm492, %v1503, -inf
    %1560 = vmax.xlane.f32.xlu0 %v1559
    %v1561 = vpop.xlane.xlu0 %1560
    %v1562 = vsel %vm492, %v1548, -inf
    %1563 = vmax.xlane.f32.xlu0 %v1562
    %v1564 = vpop.xlane.xlu0 %1563
    %v1565 = vmax.f32 %v1555, %v1561
    %v1566 = vmax.f32 %v1558, %v1564
    %v1567 = vsub.f32 %v1408, %v1565
    %v1568 = vsub.f32 %v1458, %v1566
    %v1569 = vmul.f32 %v1567, 1.442695
    %v1570 = vpow.pop %v1569
    %v1571 = vmul.f32 %v1568, 1.442695
    %v1572 = vpow.pop %v1571
    %v1573 = vsub.f32 %v1503, %v1565
    %v1574 = vsub.f32 %v1548, %v1566
    %v1575 = vmul.f32 %v1573, 1.442695
    %v1576 = vpow.pop %v1575
    %v1577 = vmul.f32 %v1574, 1.442695
    %v1578 = vpow.pop %v1577
    %v1579 = vsel %vm675, %v1570, 0.0
    %1580 = vadd.xlane.f32.xlu0 %v1579
    %v1581 = vpop.xlane.xlu0 %1580
    %v1582 = vsel %vm675, %v1572, 0.0
    %1583 = vadd.xlane.f32.xlu0 %v1582
    %v1584 = vpop.xlane.xlu0 %1583
    %v1585 = vsel %vm492, %v1576, 0.0
    %1586 = vadd.xlane.f32.xlu0 %v1585
    %v1587 = vpop.xlane.xlu0 %1586
    %v1588 = vsel %vm492, %v1578, 0.0
    %1589 = vadd.xlane.f32.xlu0 %v1588
    %v1590 = vpop.xlane.xlu0 %1589
    %v1591 = vadd.f32 %v1581, %v1587
    %v1592 = vadd.f32 %v1584, %v1590
    %v1593 = vrcp.pop %v1591
    %v1594 = vrcp.pop %v1592
    %v1595 = vmul.f32 %v1570, %v1593
    %v1596 = vmul.f32 %v1572, %v1594
    %v1597 = vpack.c.bf16 %v1595, %v1595
    %v1598 = vpack.c.bf16 %v1596, %v1596
    %v1599 = vmul.f32 %v1576, %v1593
    %v1600 = vmul.f32 %v1578, %v1594
    %v1601 = vpack.c.bf16 %v1599, %v1599
    %v1602 = vpack.c.bf16 %v1600, %v1600
    %1603 = vrot.lane.b32.xlu0 %v490, 48
    %v1604 = vpop.permute.xlu0 %1603
    %v1606 = vsel %vm492, %v1601, 0
    %v1609 = vsel %vm731, %v1604, 0
    %1611 = vmatprep.subr.bf16.mxu0 0
    %1612 = vmatpush1.bf16.msra.mxu0 0
    %1613 = vmatprep.subr.bf16.mxu0 0
    %1614 = vmatpush1.bf16.msra.mxu0 0
    %1615 = vmatprep.subr.bf16.mxu0 0
    %1616 = vmatpush1.bf16.msra.mxu0 0
    %1617 = vmatprep.subr.bf16.mxu0 0
    %1618 = vmatpush1.bf16.msra.mxu0 0
    %1619 = vmatprep.subr.bf16.mxu0 0
    %1620 = vmatpush1.bf16.msra.mxu0 0
    %1621 = vmatprep.subr.bf16.mxu0 0
    %1622 = vmatpush1.bf16.msra.mxu0 0
    %1623 = vmatprep.subr.bf16.mxu0 0
    %1624 = vmatpush1.bf16.msra.mxu0 0
    %1625 = vmatprep.subr.bf16.mxu0 0
    %1626 = vmatpush1.bf16.msra.mxu0 %v1609
    %1627 = vmatprep.subr.bf16.mxu0 0
    %1628 = vmatpush2.bf16.msra.mxu0 0
    %1629 = vmatprep.subr.bf16.mxu0 0
    %1630 = vmatpush2.bf16.msra.mxu0 0
    %1631 = vmatprep.subr.bf16.mxu0 0
    %1632 = vmatpush2.bf16.msra.mxu0 0
    %1633 = vmatprep.subr.bf16.mxu0 0
    %1634 = vmatpush2.bf16.msra.mxu0 0
    %1635 = vmatprep.subr.bf16.mxu0 0
    %1636 = vmatpush2.bf16.msra.mxu0 0
    %1637 = vmatprep.subr.bf16.mxu0 0
    %1638 = vmatpush2.bf16.msra.mxu0 0
    %1639 = vmatprep.subr.bf16.mxu0 0
    %1640 = vmatpush2.bf16.msra.mxu0 0
    %1641 = vmatprep.subr.bf16.mxu0 0
    %1642 = vmatpush2.bf16.msra.mxu0 0
    %1643 = vmatprep.mubr.bf16.mxu0 0
    %1644 = vmatmul.mubr.bf16.gmra.mxu0 %v1606
    %v1645 = vpop.f32.mrf.mxu0
    %v1646 = vadd.f32 0.0, %v1645
    %v1647 = vpop.f32.mrf.mxu0
    %v1648 = vpop.f32.mrf.mxu0
    %v1649 = vpop.f32.mrf.mxu0
    %1650 = vdwg.mxu0
    %1651 = vrot.lane.b32.xlu0 %v491, 48
    %v1652 = vpop.permute.xlu0 %1651
    %v1654 = vsel %vm492, %v1602, 0
    %v1657 = vsel %vm731, %v1652, 0
    %1659 = vmatprep.subr.bf16.mxu0 0
    %1660 = vmatpush1.bf16.msra.mxu0 0
    %1661 = vmatprep.subr.bf16.mxu0 0
    %1662 = vmatpush1.bf16.msra.mxu0 0
    %1663 = vmatprep.subr.bf16.mxu0 0
    %1664 = vmatpush1.bf16.msra.mxu0 0
    %1665 = vmatprep.subr.bf16.mxu0 0
    %1666 = vmatpush1.bf16.msra.mxu0 0
    %1667 = vmatprep.subr.bf16.mxu0 0
    %1668 = vmatpush1.bf16.msra.mxu0 0
    %1669 = vmatprep.subr.bf16.mxu0 0
    %1670 = vmatpush1.bf16.msra.mxu0 0
    %1671 = vmatprep.subr.bf16.mxu0 0
    %1672 = vmatpush1.bf16.msra.mxu0 0
    %1673 = vmatprep.subr.bf16.mxu0 0
    %1674 = vmatpush1.bf16.msra.mxu0 %v1657
    %1675 = vmatprep.subr.bf16.mxu0 0
    %1676 = vmatpush2.bf16.msra.mxu0 0
    %1677 = vmatprep.subr.bf16.mxu0 0
    %1678 = vmatpush2.bf16.msra.mxu0 0
    %1679 = vmatprep.subr.bf16.mxu0 0
    %1680 = vmatpush2.bf16.msra.mxu0 0
    %1681 = vmatprep.subr.bf16.mxu0 0
    %1682 = vmatpush2.bf16.msra.mxu0 0
    %1683 = vmatprep.subr.bf16.mxu0 0
    %1684 = vmatpush2.bf16.msra.mxu0 0
    %1685 = vmatprep.subr.bf16.mxu0 0
    %1686 = vmatpush2.bf16.msra.mxu0 0
    %1687 = vmatprep.subr.bf16.mxu0 0
    %1688 = vmatpush2.bf16.msra.mxu0 0
    %1689 = vmatprep.subr.bf16.mxu0 0
    %1690 = vmatpush2.bf16.msra.mxu0 0
    %1691 = vmatprep.mubr.bf16.mxu0 0
    %1692 = vmatmul.mubr.bf16.gmra.mxu0 %v1654
    %v1693 = vpop.f32.mrf.mxu0
    %v1694 = vadd.f32 0.0, %v1693
    %v1695 = vpop.f32.mrf.mxu0
    %v1696 = vpop.f32.mrf.mxu0
    %v1697 = vpop.f32.mrf.mxu0
    %1698 = vdwg.mxu0
    %1699 = vrot.lane.b32.xlu0 %v424, 112
    %v1700 = vpop.permute.xlu0 %1699
    %v1703 = vsel %vm675, %v1597, 0
    %1705 = vmatprep.subr.bf16.mxu0 0
    %1706 = vmatpush1.bf16.msra.mxu0 0
    %1707 = vmatprep.subr.bf16.mxu0 0
    %1708 = vmatpush1.bf16.msra.mxu0 0
    %1709 = vmatprep.subr.bf16.mxu0 0
    %1710 = vmatpush1.bf16.msra.mxu0 0
    %1711 = vmatprep.subr.bf16.mxu0 0
    %1712 = vmatpush1.bf16.msra.mxu0 0
    %1713 = vmatprep.subr.bf16.mxu0 0
    %1714 = vmatpush1.bf16.msra.mxu0 0
    %1715 = vmatprep.subr.bf16.mxu0 0
    %1716 = vmatpush1.bf16.msra.mxu0 0
    %1717 = vmatprep.subr.bf16.mxu0 0
    %1718 = vmatpush1.bf16.msra.mxu0 0
    %1719 = vmatprep.subr.bf16.mxu0 0
    %1720 = vmatpush1.bf16.msra.mxu0 %v1700
    %1721 = vmatprep.subr.bf16.mxu0 0
    %1722 = vmatpush2.bf16.msra.mxu0 0
    %1723 = vmatprep.subr.bf16.mxu0 0
    %1724 = vmatpush2.bf16.msra.mxu0 0
    %1725 = vmatprep.subr.bf16.mxu0 0
    %1726 = vmatpush2.bf16.msra.mxu0 0
    %1727 = vmatprep.subr.bf16.mxu0 0
    %1728 = vmatpush2.bf16.msra.mxu0 0
    %1729 = vmatprep.subr.bf16.mxu0 0
    %1730 = vmatpush2.bf16.msra.mxu0 0
    %1731 = vmatprep.subr.bf16.mxu0 0
    %1732 = vmatpush2.bf16.msra.mxu0 0
    %1733 = vmatprep.subr.bf16.mxu0 0
    %1734 = vmatpush2.bf16.msra.mxu0 0
    %1735 = vmatprep.subr.bf16.mxu0 0
    %1736 = vmatpush2.bf16.msra.mxu0 0
    %1737 = vmatprep.mubr.bf16.mxu0 0
    %1738 = vmatmul.mubr.bf16.gmra.mxu0 %v1703
    %v1739 = vpop.f32.mrf.mxu0
    %v1740 = vadd.f32 %v1646, %v1739
    %v1741 = vpop.f32.mrf.mxu0
    %v1742 = vpop.f32.mrf.mxu0
    %v1743 = vpop.f32.mrf.mxu0
    %1744 = vdwg.mxu0
    %1745 = vrot.lane.b32.xlu0 %v425, 112
    %v1746 = vpop.permute.xlu0 %1745
    %v1749 = vsel %vm675, %v1598, 0
    %1751 = vmatprep.subr.bf16.mxu0 0
    %1752 = vmatpush1.bf16.msra.mxu0 0
    %1753 = vmatprep.subr.bf16.mxu0 0
    %1754 = vmatpush1.bf16.msra.mxu0 0
    %1755 = vmatprep.subr.bf16.mxu0 0
    %1756 = vmatpush1.bf16.msra.mxu0 0
    %1757 = vmatprep.subr.bf16.mxu0 0
    %1758 = vmatpush1.bf16.msra.mxu0 0
    %1759 = vmatprep.subr.bf16.mxu0 0
    %1760 = vmatpush1.bf16.msra.mxu0 0
    %1761 = vmatprep.subr.bf16.mxu0 0
    %1762 = vmatpush1.bf16.msra.mxu0 0
    %1763 = vmatprep.subr.bf16.mxu0 0
    %1764 = vmatpush1.bf16.msra.mxu0 0
    %1765 = vmatprep.subr.bf16.mxu0 0
    %1766 = vmatpush1.bf16.msra.mxu0 %v1746
    %1767 = vmatprep.subr.bf16.mxu0 0
    %1768 = vmatpush2.bf16.msra.mxu0 0
    %1769 = vmatprep.subr.bf16.mxu0 0
    %1770 = vmatpush2.bf16.msra.mxu0 0
    %1771 = vmatprep.subr.bf16.mxu0 0
    %1772 = vmatpush2.bf16.msra.mxu0 0
    %1773 = vmatprep.subr.bf16.mxu0 0
    %1774 = vmatpush2.bf16.msra.mxu0 0
    %1775 = vmatprep.subr.bf16.mxu0 0
    %1776 = vmatpush2.bf16.msra.mxu0 0
    %1777 = vmatprep.subr.bf16.mxu0 0
    %1778 = vmatpush2.bf16.msra.mxu0 0
    %1779 = vmatprep.subr.bf16.mxu0 0
    %1780 = vmatpush2.bf16.msra.mxu0 0
    %1781 = vmatprep.subr.bf16.mxu0 0
    %1782 = vmatpush2.bf16.msra.mxu0 0
    %1783 = vmatprep.mubr.bf16.mxu0 0
    %1784 = vmatmul.mubr.bf16.gmra.mxu0 %v1749
    %v1785 = vpop.f32.mrf.mxu0
    %v1786 = vadd.f32 %v1694, %v1785
    %v1787 = vpop.f32.mrf.mxu0
    %v1788 = vpop.f32.mrf.mxu0
    %v1789 = vpop.f32.mrf.mxu0
    %1790 = vdwg.mxu0
    %v1791 = vpack.c.bf16 %v1740, %v1740
    %v1792 = vpack.c.bf16 %v1786, %v1786
    %v1795 = vunpack.c.l.b16 %v1791
    %v1796 = vunpack.c.l.b16 %v1792
    %v1797 = vpack.c.b16 %v1795, %v1795
    %v1798 = vpack.c.b16 %v1796, %v1796
    %1799 = vrot.lane.b32.xlu0 %v1797, 16
    %v1800 = vpop.permute.xlu0 %1799
    %1801 = vrot.lane.b32.xlu0 %v1798, 16
    %v1802 = vpop.permute.xlu0 %1801
    %vm1805 = vcmask 191616
    %1806 = vst.msk [vmem:[#allocation2] sm:$0xf] %vm1805, %v1800
    %1807 = vst.msk [vmem:[#allocation2 + $0x4] sm:$0xf] %vm1805, %v1802
    %1808 = vrot.lane.b32.xlu0 %v490, 104
    %v1809 = vpop.permute.xlu0 %1808
    %1810 = vrot.lane.b32.xlu0 %v357, 104
    %v1811 = vpop.permute.xlu0 %1810
    %v1813 = vsel %vm492, %v1809, 0
    %v1816 = vsel %vm492, %v1811, 0
    %1818 = vmatprep.subr.bf16.mxu0 0
    %1819 = vmatpush1.bf16.xpose.msra.mxu0 0
    %1820 = vmatprep.subr.bf16.mxu0 0
    %1821 = vmatpush1.bf16.xpose.msra.mxu0 0
    %1822 = vmatprep.subr.bf16.mxu0 0
    %1823 = vmatpush1.bf16.xpose.msra.mxu0 0
    %1824 = vmatprep.subr.bf16.mxu0 0
    %1825 = vmatpush1.bf16.xpose.msra.mxu0 0
    %1826 = vmatprep.subr.bf16.mxu0 0
    %1827 = vmatpush1.bf16.xpose.msra.mxu0 0
    %1828 = vmatprep.subr.bf16.mxu0 0
    %1829 = vmatpush1.bf16.xpose.msra.mxu0 0
    %1830 = vmatprep.subr.bf16.mxu0 0
    %1831 = vmatpush1.bf16.xpose.msra.mxu0 0
    %1832 = vmatprep.subr.bf16.mxu0 0
    %1833 = vmatpush1.bf16.xpose.msra.mxu0 %v1816
    %1834 = vmatprep.subr.bf16.mxu0 0
    %1835 = vmatpush2.bf16.xpose.msra.mxu0 0
    %1836 = vmatprep.subr.bf16.mxu0 0
    %1837 = vmatpush2.bf16.xpose.msra.mxu0 0
    %1838 = vmatprep.subr.bf16.mxu0 0
    %1839 = vmatpush2.bf16.xpose.msra.mxu0 0
    %1840 = vmatprep.subr.bf16.mxu0 0
    %1841 = vmatpush2.bf16.xpose.msra.mxu0 0
    %1842 = vmatprep.subr.bf16.mxu0 0
    %1843 = vmatpush2.bf16.xpose.msra.mxu0 0
    %1844 = vmatprep.subr.bf16.mxu0 0
    %1845 = vmatpush2.bf16.xpose.msra.mxu0 0
    %1846 = vmatprep.subr.bf16.mxu0 0
    %1847 = vmatpush2.bf16.xpose.msra.mxu0 0
    %1848 = vmatprep.subr.bf16.mxu0 0
    %1849 = vmatpush2.bf16.xpose.msra.mxu0 0
    %1850 = vmatprep.mubr.bf16.mxu0 0
    %1851 = vmatmul.mubr.bf16.gmra.mxu0 %v1813
    %v1852 = vpop.f32.mrf.mxu0
    %v1853 = vadd.f32 0.0, %v1852
    %v1854 = vpop.f32.mrf.mxu0
    %v1855 = vpop.f32.mrf.mxu0
    %v1856 = vpop.f32.mrf.mxu0
    %1857 = vdwg.mxu0
    %1858 = vrot.lane.b32.xlu0 %v491, 104
    %v1859 = vpop.permute.xlu0 %1858
    %1860 = vrot.lane.b32.xlu0 %v358, 104
    %v1861 = vpop.permute.xlu0 %1860
    %v1863 = vsel %vm492, %v1859, 0
    %v1866 = vsel %vm492, %v1861, 0
    %1868 = vmatprep.subr.bf16.mxu0 0
    %1869 = vmatpush1.bf16.xpose.msra.mxu0 0
    %1870 = vmatprep.subr.bf16.mxu0 0
    %1871 = vmatpush1.bf16.xpose.msra.mxu0 0
    %1872 = vmatprep.subr.bf16.mxu0 0
    %1873 = vmatpush1.bf16.xpose.msra.mxu0 0
    %1874 = vmatprep.subr.bf16.mxu0 0
    %1875 = vmatpush1.bf16.xpose.msra.mxu0 0
    %1876 = vmatprep.subr.bf16.mxu0 0
    %1877 = vmatpush1.bf16.xpose.msra.mxu0 0
    %1878 = vmatprep.subr.bf16.mxu0 0
    %1879 = vmatpush1.bf16.xpose.msra.mxu0 0
    %1880 = vmatprep.subr.bf16.mxu0 0
    %1881 = vmatpush1.bf16.xpose.msra.mxu0 0
    %1882 = vmatprep.subr.bf16.mxu0 0
    %1883 = vmatpush1.bf16.xpose.msra.mxu0 %v1866
    %1884 = vmatprep.subr.bf16.mxu0 0
    %1885 = vmatpush2.bf16.xpose.msra.mxu0 0
    %1886 = vmatprep.subr.bf16.mxu0 0
    %1887 = vmatpush2.bf16.xpose.msra.mxu0 0
    %1888 = vmatprep.subr.bf16.mxu0 0
    %1889 = vmatpush2.bf16.xpose.msra.mxu0 0
    %1890 = vmatprep.subr.bf16.mxu0 0
    %1891 = vmatpush2.bf16.xpose.msra.mxu0 0
    %1892 = vmatprep.subr.bf16.mxu0 0
    %1893 = vmatpush2.bf16.xpose.msra.mxu0 0
    %1894 = vmatprep.subr.bf16.mxu0 0
    %1895 = vmatpush2.bf16.xpose.msra.mxu0 0
    %1896 = vmatprep.subr.bf16.mxu0 0
    %1897 = vmatpush2.bf16.xpose.msra.mxu0 0
    %1898 = vmatprep.subr.bf16.mxu0 0
    %1899 = vmatpush2.bf16.xpose.msra.mxu0 0
    %1900 = vmatprep.mubr.bf16.mxu0 0
    %1901 = vmatmul.mubr.bf16.gmra.mxu0 %v1863
    %v1902 = vpop.f32.mrf.mxu0
    %v1903 = vadd.f32 0.0, %v1902
    %v1904 = vpop.f32.mrf.mxu0
    %v1905 = vpop.f32.mrf.mxu0
    %v1906 = vpop.f32.mrf.mxu0
    %1907 = vdwg.mxu0
    %1908 = vrot.lane.b32.xlu0 %v490, 72
    %v1909 = vpop.permute.xlu0 %1908
    %v1911 = vsel %vm492, %v1909, 0
    %1913 = vmatprep.subr.bf16.mxu0 0
    %1914 = vmatpush1.bf16.xpose.msra.mxu0 0
    %1915 = vmatprep.subr.bf16.mxu0 0
    %1916 = vmatpush1.bf16.xpose.msra.mxu0 0
    %1917 = vmatprep.subr.bf16.mxu0 0
    %1918 = vmatpush1.bf16.xpose.msra.mxu0 0
    %1919 = vmatprep.subr.bf16.mxu0 0
    %1920 = vmatpush1.bf16.xpose.msra.mxu0 0
    %1921 = vmatprep.subr.bf16.mxu0 0
    %1922 = vmatpush1.bf16.xpose.msra.mxu0 0
    %1923 = vmatprep.subr.bf16.mxu0 0
    %1924 = vmatpush1.bf16.xpose.msra.mxu0 0
    %1925 = vmatprep.subr.bf16.mxu0 0
    %1926 = vmatpush1.bf16.xpose.msra.mxu0 0
    %1927 = vmatprep.subr.bf16.mxu0 0
    %1928 = vmatpush1.bf16.xpose.msra.mxu0 %v1911
    %1929 = vmatprep.subr.bf16.mxu0 0
    %1930 = vmatpush2.bf16.xpose.msra.mxu0 0
    %1931 = vmatprep.subr.bf16.mxu0 0
    %1932 = vmatpush2.bf16.xpose.msra.mxu0 0
    %1933 = vmatprep.subr.bf16.mxu0 0
    %1934 = vmatpush2.bf16.xpose.msra.mxu0 0
    %1935 = vmatprep.subr.bf16.mxu0 0
    %1936 = vmatpush2.bf16.xpose.msra.mxu0 0
    %1937 = vmatprep.subr.bf16.mxu0 0
    %1938 = vmatpush2.bf16.xpose.msra.mxu0 0
    %1939 = vmatprep.subr.bf16.mxu0 0
    %1940 = vmatpush2.bf16.xpose.msra.mxu0 0
    %1941 = vmatprep.subr.bf16.mxu0 0
    %1942 = vmatpush2.bf16.xpose.msra.mxu0 0
    %1943 = vmatprep.subr.bf16.mxu0 0
    %1944 = vmatpush2.bf16.xpose.msra.mxu0 0
    %1945 = vmatprep.mubr.bf16.mxu0 0
    %1946 = vmatmul.mubr.bf16.gmra.mxu0 %v1813
    %v1947 = vpop.f32.mrf.mxu0
    %v1948 = vadd.f32 0.0, %v1947
    %v1949 = vpop.f32.mrf.mxu0
    %v1950 = vpop.f32.mrf.mxu0
    %v1951 = vpop.f32.mrf.mxu0
    %1952 = vdwg.mxu0
    %1953 = vrot.lane.b32.xlu0 %v491, 72
    %v1954 = vpop.permute.xlu0 %1953
    %v1956 = vsel %vm492, %v1954, 0
    %1958 = vmatprep.subr.bf16.mxu0 0
    %1959 = vmatpush1.bf16.xpose.msra.mxu0 0
    %1960 = vmatprep.subr.bf16.mxu0 0
    %1961 = vmatpush1.bf16.xpose.msra.mxu0 0
    %1962 = vmatprep.subr.bf16.mxu0 0
    %1963 = vmatpush1.bf16.xpose.msra.mxu0 0
    %1964 = vmatprep.subr.bf16.mxu0 0
    %1965 = vmatpush1.bf16.xpose.msra.mxu0 0
    %1966 = vmatprep.subr.bf16.mxu0 0
    %1967 = vmatpush1.bf16.xpose.msra.mxu0 0
    %1968 = vmatprep.subr.bf16.mxu0 0
    %1969 = vmatpush1.bf16.xpose.msra.mxu0 0
    %1970 = vmatprep.subr.bf16.mxu0 0
    %1971 = vmatpush1.bf16.xpose.msra.mxu0 0
    %1972 = vmatprep.subr.bf16.mxu0 0
    %1973 = vmatpush1.bf16.xpose.msra.mxu0 %v1956
    %1974 = vmatprep.subr.bf16.mxu0 0
    %1975 = vmatpush2.bf16.xpose.msra.mxu0 0
    %1976 = vmatprep.subr.bf16.mxu0 0
    %1977 = vmatpush2.bf16.xpose.msra.mxu0 0
    %1978 = vmatprep.subr.bf16.mxu0 0
    %1979 = vmatpush2.bf16.xpose.msra.mxu0 0
    %1980 = vmatprep.subr.bf16.mxu0 0
    %1981 = vmatpush2.bf16.xpose.msra.mxu0 0
    %1982 = vmatprep.subr.bf16.mxu0 0
    %1983 = vmatpush2.bf16.xpose.msra.mxu0 0
    %1984 = vmatprep.subr.bf16.mxu0 0
    %1985 = vmatpush2.bf16.xpose.msra.mxu0 0
    %1986 = vmatprep.subr.bf16.mxu0 0
    %1987 = vmatpush2.bf16.xpose.msra.mxu0 0
    %1988 = vmatprep.subr.bf16.mxu0 0
    %1989 = vmatpush2.bf16.xpose.msra.mxu0 0
    %1990 = vmatprep.mubr.bf16.mxu0 0
    %1991 = vmatmul.mubr.bf16.gmra.mxu0 %v1863
    %v1992 = vpop.f32.mrf.mxu0
    %v1993 = vadd.f32 0.0, %v1992
    %v1994 = vpop.f32.mrf.mxu0
    %v1995 = vpop.f32.mrf.mxu0
    %v1996 = vpop.f32.mrf.mxu0
    %1997 = vdwg.mxu0
    %v1998 = vsel %vm675, %v1853, -inf
    %1999 = vmax.xlane.f32.xlu0 %v1998
    %v2000 = vpop.xlane.xlu0 %1999
    %v2001 = vsel %vm675, %v1903, -inf
    %2002 = vmax.xlane.f32.xlu0 %v2001
    %v2003 = vpop.xlane.xlu0 %2002
    %v2004 = vsel %vm492, %v1948, -inf
    %2005 = vmax.xlane.f32.xlu0 %v2004
    %v2006 = vpop.xlane.xlu0 %2005
    %v2007 = vsel %vm492, %v1993, -inf
    %2008 = vmax.xlane.f32.xlu0 %v2007
    %v2009 = vpop.xlane.xlu0 %2008
    %v2010 = vmax.f32 %v2000, %v2006
    %v2011 = vmax.f32 %v2003, %v2009
    %v2012 = vsub.f32 %v1853, %v2010
    %v2013 = vsub.f32 %v1903, %v2011
    %v2014 = vmul.f32 %v2012, 1.442695
    %v2015 = vpow.pop %v2014
    %v2016 = vmul.f32 %v2013, 1.442695
    %v2017 = vpow.pop %v2016
    %v2018 = vsub.f32 %v1948, %v2010
    %v2019 = vsub.f32 %v1993, %v2011
    %v2020 = vmul.f32 %v2018, 1.442695
    %v2021 = vpow.pop %v2020
    %v2022 = vmul.f32 %v2019, 1.442695
    %v2023 = vpow.pop %v2022
    %v2024 = vsel %vm675, %v2015, 0.0
    %2025 = vadd.xlane.f32.xlu0 %v2024
    %v2026 = vpop.xlane.xlu0 %2025
    %v2027 = vsel %vm675, %v2017, 0.0
    %2028 = vadd.xlane.f32.xlu0 %v2027
    %v2029 = vpop.xlane.xlu0 %2028
    %v2030 = vsel %vm492, %v2021, 0.0
    %2031 = vadd.xlane.f32.xlu0 %v2030
    %v2032 = vpop.xlane.xlu0 %2031
    %v2033 = vsel %vm492, %v2023, 0.0
    %2034 = vadd.xlane.f32.xlu0 %v2033
    %v2035 = vpop.xlane.xlu0 %2034
    %v2036 = vadd.f32 %v2026, %v2032
    %v2037 = vadd.f32 %v2029, %v2035
    %v2038 = vrcp.pop %v2036
    %v2039 = vrcp.pop %v2037
    %v2040 = vmul.f32 %v2015, %v2038
    %v2041 = vmul.f32 %v2017, %v2039
    %v2042 = vpack.c.bf16 %v2040, %v2040
    %v2043 = vpack.c.bf16 %v2041, %v2041
    %v2044 = vmul.f32 %v2021, %v2038
    %v2045 = vmul.f32 %v2023, %v2039
    %v2046 = vpack.c.bf16 %v2044, %v2044
    %v2047 = vpack.c.bf16 %v2045, %v2045
    %2048 = vrot.lane.b32.xlu0 %v490, 40
    %v2049 = vpop.permute.xlu0 %2048
    %v2051 = vsel %vm492, %v2046, 0
    %v2054 = vsel %vm731, %v2049, 0
    %2056 = vmatprep.subr.bf16.mxu0 0
    %2057 = vmatpush1.bf16.msra.mxu0 0
    %2058 = vmatprep.subr.bf16.mxu0 0
    %2059 = vmatpush1.bf16.msra.mxu0 0
    %2060 = vmatprep.subr.bf16.mxu0 0
    %2061 = vmatpush1.bf16.msra.mxu0 0
    %2062 = vmatprep.subr.bf16.mxu0 0
    %2063 = vmatpush1.bf16.msra.mxu0 0
    %2064 = vmatprep.subr.bf16.mxu0 0
    %2065 = vmatpush1.bf16.msra.mxu0 0
    %2066 = vmatprep.subr.bf16.mxu0 0
    %2067 = vmatpush1.bf16.msra.mxu0 0
    %2068 = vmatprep.subr.bf16.mxu0 0
    %2069 = vmatpush1.bf16.msra.mxu0 0
    %2070 = vmatprep.subr.bf16.mxu0 0
    %2071 = vmatpush1.bf16.msra.mxu0 %v2054
    %2072 = vmatprep.subr.bf16.mxu0 0
    %2073 = vmatpush2.bf16.msra.mxu0 0
    %2074 = vmatprep.subr.bf16.mxu0 0
    %2075 = vmatpush2.bf16.msra.mxu0 0
    %2076 = vmatprep.subr.bf16.mxu0 0
    %2077 = vmatpush2.bf16.msra.mxu0 0
    %2078 = vmatprep.subr.bf16.mxu0 0
    %2079 = vmatpush2.bf16.msra.mxu0 0
    %2080 = vmatprep.subr.bf16.mxu0 0
    %2081 = vmatpush2.bf16.msra.mxu0 0
    %2082 = vmatprep.subr.bf16.mxu0 0
    %2083 = vmatpush2.bf16.msra.mxu0 0
    %2084 = vmatprep.subr.bf16.mxu0 0
    %2085 = vmatpush2.bf16.msra.mxu0 0
    %2086 = vmatprep.subr.bf16.mxu0 0
    %2087 = vmatpush2.bf16.msra.mxu0 0
    %2088 = vmatprep.mubr.bf16.mxu0 0
    %2089 = vmatmul.mubr.bf16.gmra.mxu0 %v2051
    %v2090 = vpop.f32.mrf.mxu0
    %v2091 = vadd.f32 0.0, %v2090
    %v2092 = vpop.f32.mrf.mxu0
    %v2093 = vpop.f32.mrf.mxu0
    %v2094 = vpop.f32.mrf.mxu0
    %2095 = vdwg.mxu0
    %2096 = vrot.lane.b32.xlu0 %v491, 40
    %v2097 = vpop.permute.xlu0 %2096
    %v2099 = vsel %vm492, %v2047, 0
    %v2102 = vsel %vm731, %v2097, 0
    %2104 = vmatprep.subr.bf16.mxu0 0
    %2105 = vmatpush1.bf16.msra.mxu0 0
    %2106 = vmatprep.subr.bf16.mxu0 0
    %2107 = vmatpush1.bf16.msra.mxu0 0
    %2108 = vmatprep.subr.bf16.mxu0 0
    %2109 = vmatpush1.bf16.msra.mxu0 0
    %2110 = vmatprep.subr.bf16.mxu0 0
    %2111 = vmatpush1.bf16.msra.mxu0 0
    %2112 = vmatprep.subr.bf16.mxu0 0
    %2113 = vmatpush1.bf16.msra.mxu0 0
    %2114 = vmatprep.subr.bf16.mxu0 0
    %2115 = vmatpush1.bf16.msra.mxu0 0
    %2116 = vmatprep.subr.bf16.mxu0 0
    %2117 = vmatpush1.bf16.msra.mxu0 0
    %2118 = vmatprep.subr.bf16.mxu0 0
    %2119 = vmatpush1.bf16.msra.mxu0 %v2102
    %2120 = vmatprep.subr.bf16.mxu0 0
    %2121 = vmatpush2.bf16.msra.mxu0 0
    %2122 = vmatprep.subr.bf16.mxu0 0
    %2123 = vmatpush2.bf16.msra.mxu0 0
    %2124 = vmatprep.subr.bf16.mxu0 0
    %2125 = vmatpush2.bf16.msra.mxu0 0
    %2126 = vmatprep.subr.bf16.mxu0 0
    %2127 = vmatpush2.bf16.msra.mxu0 0
    %2128 = vmatprep.subr.bf16.mxu0 0
    %2129 = vmatpush2.bf16.msra.mxu0 0
    %2130 = vmatprep.subr.bf16.mxu0 0
    %2131 = vmatpush2.bf16.msra.mxu0 0
    %2132 = vmatprep.subr.bf16.mxu0 0
    %2133 = vmatpush2.bf16.msra.mxu0 0
    %2134 = vmatprep.subr.bf16.mxu0 0
    %2135 = vmatpush2.bf16.msra.mxu0 0
    %2136 = vmatprep.mubr.bf16.mxu0 0
    %2137 = vmatmul.mubr.bf16.gmra.mxu0 %v2099
    %v2138 = vpop.f32.mrf.mxu0
    %v2139 = vadd.f32 0.0, %v2138
    %v2140 = vpop.f32.mrf.mxu0
    %v2141 = vpop.f32.mrf.mxu0
    %v2142 = vpop.f32.mrf.mxu0
    %2143 = vdwg.mxu0
    %2144 = vrot.lane.b32.xlu0 %v424, 104
    %v2145 = vpop.permute.xlu0 %2144
    %v2148 = vsel %vm675, %v2042, 0
    %2150 = vmatprep.subr.bf16.mxu0 0
    %2151 = vmatpush1.bf16.msra.mxu0 0
    %2152 = vmatprep.subr.bf16.mxu0 0
    %2153 = vmatpush1.bf16.msra.mxu0 0
    %2154 = vmatprep.subr.bf16.mxu0 0
    %2155 = vmatpush1.bf16.msra.mxu0 0
    %2156 = vmatprep.subr.bf16.mxu0 0
    %2157 = vmatpush1.bf16.msra.mxu0 0
    %2158 = vmatprep.subr.bf16.mxu0 0
    %2159 = vmatpush1.bf16.msra.mxu0 0
    %2160 = vmatprep.subr.bf16.mxu0 0
    %2161 = vmatpush1.bf16.msra.mxu0 0
    %2162 = vmatprep.subr.bf16.mxu0 0
    %2163 = vmatpush1.bf16.msra.mxu0 0
    %2164 = vmatprep.subr.bf16.mxu0 0
    %2165 = vmatpush1.bf16.msra.mxu0 %v2145
    %2166 = vmatprep.subr.bf16.mxu0 0
    %2167 = vmatpush2.bf16.msra.mxu0 0
    %2168 = vmatprep.subr.bf16.mxu0 0
    %2169 = vmatpush2.bf16.msra.mxu0 0
    %2170 = vmatprep.subr.bf16.mxu0 0
    %2171 = vmatpush2.bf16.msra.mxu0 0
    %2172 = vmatprep.subr.bf16.mxu0 0
    %2173 = vmatpush2.bf16.msra.mxu0 0
    %2174 = vmatprep.subr.bf16.mxu0 0
    %2175 = vmatpush2.bf16.msra.mxu0 0
    %2176 = vmatprep.subr.bf16.mxu0 0
    %2177 = vmatpush2.bf16.msra.mxu0 0
    %2178 = vmatprep.subr.bf16.mxu0 0
    %2179 = vmatpush2.bf16.msra.mxu0 0
    %2180 = vmatprep.subr.bf16.mxu0 0
    %2181 = vmatpush2.bf16.msra.mxu0 0
    %2182 = vmatprep.mubr.bf16.mxu0 0
    %2183 = vmatmul.mubr.bf16.gmra.mxu0 %v2148
    %v2184 = vpop.f32.mrf.mxu0
    %v2185 = vadd.f32 %v2091, %v2184
    %v2186 = vpop.f32.mrf.mxu0
    %v2187 = vpop.f32.mrf.mxu0
    %v2188 = vpop.f32.mrf.mxu0
    %2189 = vdwg.mxu0
    %2190 = vrot.lane.b32.xlu0 %v425, 104
    %v2191 = vpop.permute.xlu0 %2190
    %v2194 = vsel %vm675, %v2043, 0
    %2196 = vmatprep.subr.bf16.mxu0 0
    %2197 = vmatpush1.bf16.msra.mxu0 0
    %2198 = vmatprep.subr.bf16.mxu0 0
    %2199 = vmatpush1.bf16.msra.mxu0 0
    %2200 = vmatprep.subr.bf16.mxu0 0
    %2201 = vmatpush1.bf16.msra.mxu0 0
    %2202 = vmatprep.subr.bf16.mxu0 0
    %2203 = vmatpush1.bf16.msra.mxu0 0
    %2204 = vmatprep.subr.bf16.mxu0 0
    %2205 = vmatpush1.bf16.msra.mxu0 0
    %2206 = vmatprep.subr.bf16.mxu0 0
    %2207 = vmatpush1.bf16.msra.mxu0 0
    %2208 = vmatprep.subr.bf16.mxu0 0
    %2209 = vmatpush1.bf16.msra.mxu0 0
    %2210 = vmatprep.subr.bf16.mxu0 0
    %2211 = vmatpush1.bf16.msra.mxu0 %v2191
    %2212 = vmatprep.subr.bf16.mxu0 0
    %2213 = vmatpush2.bf16.msra.mxu0 0
    %2214 = vmatprep.subr.bf16.mxu0 0
    %2215 = vmatpush2.bf16.msra.mxu0 0
    %2216 = vmatprep.subr.bf16.mxu0 0
    %2217 = vmatpush2.bf16.msra.mxu0 0
    %2218 = vmatprep.subr.bf16.mxu0 0
    %2219 = vmatpush2.bf16.msra.mxu0 0
    %2220 = vmatprep.subr.bf16.mxu0 0
    %2221 = vmatpush2.bf16.msra.mxu0 0
    %2222 = vmatprep.subr.bf16.mxu0 0
    %2223 = vmatpush2.bf16.msra.mxu0 0
    %2224 = vmatprep.subr.bf16.mxu0 0
    %2225 = vmatpush2.bf16.msra.mxu0 0
    %2226 = vmatprep.subr.bf16.mxu0 0
    %2227 = vmatpush2.bf16.msra.mxu0 0
    %2228 = vmatprep.mubr.bf16.mxu0 0
    %2229 = vmatmul.mubr.bf16.gmra.mxu0 %v2194
    %v2230 = vpop.f32.mrf.mxu0
    %v2231 = vadd.f32 %v2139, %v2230
    %v2232 = vpop.f32.mrf.mxu0
    %v2233 = vpop.f32.mrf.mxu0
    %v2234 = vpop.f32.mrf.mxu0
    %2235 = vdwg.mxu0
    %v2236 = vpack.c.bf16 %v2185, %v2185
    %v2237 = vpack.c.bf16 %v2231, %v2231
    %v2240 = vunpack.c.l.b16 %v2236
    %v2241 = vunpack.c.l.b16 %v2237
    %v2242 = vpack.c.b16 %v2240, %v2240
    %v2243 = vpack.c.b16 %v2241, %v2241
    %2244 = vrot.lane.b32.xlu0 %v2242, 24
    %v2245 = vpop.permute.xlu0 %2244
    %2246 = vrot.lane.b32.xlu0 %v2243, 24
    %v2247 = vpop.permute.xlu0 %2246
    %vm2250 = vcmask 257216
    %2251 = vst.msk [vmem:[#allocation2] sm:$0xf] %vm2250, %v2245
    %2252 = vst.msk [vmem:[#allocation2 + $0x4] sm:$0xf] %vm2250, %v2247
    %v2253 = vld [vmem:[#allocation2] sm:$0xf]
    %v2254 = vld [vmem:[#allocation2 + $0x4] sm:$0xf]
    %v2255 = vld [vmem:[%s9] sm:$0xf]
    %v2256 = vld [vmem:[%s9 + $0x4] sm:$0xf]
    %v2257 = vld [vmem:[%s9 + $0x8] sm:$0xf]
    %v2258 = vld [vmem:[%s9 + $0xc] sm:$0xf]
    %v2261 = vunpack.c.l.b16 %v2253
    %v2262 = vunpack.c.l.b16 %v2254
    %v2263 = vpack.c.b16 %v2262, %v2261
    %v2268 = vunpack.c.l.b16 %v2255
    %v2269 = vunpack.c.l.b16 %v2256
    %v2270 = vunpack.c.l.b16 %v2257
    %v2271 = vunpack.c.l.b16 %v2258
    %v2272 = vpack.c.b16 %v2269, %v2268
    %v2273 = vpack.c.b16 %v2271, %v2270
    %v2277 = vsel %vm161, %v2263, 0
    %2279 = vmatprep.subr.bf16.mxu0 0
    %2280 = vmatpush1.bf16.msra.mxu0 0
    %2281 = vmatprep.subr.bf16.mxu0 0
    %2282 = vmatpush1.bf16.msra.mxu0 0
    %2283 = vmatprep.subr.bf16.mxu0 0
    %2284 = vmatpush1.bf16.msra.mxu0 0
    %2285 = vmatprep.subr.bf16.mxu0 0
    %2286 = vmatpush1.bf16.msra.mxu0 0
    %2287 = vmatprep.subr.bf16.mxu0 0
    %2288 = vmatpush1.bf16.msra.mxu0 0
    %2289 = vmatprep.subr.bf16.mxu0 0
    %2290 = vmatpush1.bf16.msra.mxu0 0
    %2291 = vmatprep.subr.bf16.mxu0 0
    %2292 = vmatpush1.bf16.msra.mxu0 %v2273
    %2293 = vmatprep.subr.bf16.mxu0 0
    %2294 = vmatpush1.bf16.msra.mxu0 %v2272
    %2295 = vmatprep.subr.bf16.mxu0 0
    %2296 = vmatpush2.bf16.msra.mxu0 0
    %2297 = vmatprep.subr.bf16.mxu0 0
    %2298 = vmatpush2.bf16.msra.mxu0 0
    %2299 = vmatprep.subr.bf16.mxu0 0
    %2300 = vmatpush2.bf16.msra.mxu0 0
    %2301 = vmatprep.subr.bf16.mxu0 0
    %2302 = vmatpush2.bf16.msra.mxu0 0
    %2303 = vmatprep.subr.bf16.mxu0 0
    %2304 = vmatpush2.bf16.msra.mxu0 0
    %2305 = vmatprep.subr.bf16.mxu0 0
    %2306 = vmatpush2.bf16.msra.mxu0 0
    %2307 = vmatprep.subr.bf16.mxu0 0
    %2308 = vmatpush2.bf16.msra.mxu0 0
    %2309 = vmatprep.subr.bf16.mxu0 0
    %2310 = vmatpush2.bf16.msra.mxu0 0
    %2311 = vmatprep.mubr.bf16.mxu0 0
    %2312 = vmatmul.mubr.bf16.gmra.mxu0 %v2277
    %v2313 = vpop.f32.mrf.mxu0
    %v2314 = vadd.f32 0.0, %v2313
    %v2315 = vpop.f32.mrf.mxu0
    %v2316 = vpop.f32.mrf.mxu0
    %v2317 = vadd.f32 0.0, %v2316
    %v2318 = vpop.f32.mrf.mxu0
    %2319 = vdwg.mxu0
    %2320 = vst.msk [vmem:[#allocation18] sm:$0xff] %vm161, %v2314
    %2321 = vst.msk [vmem:[#allocation18 + $0x8] sm:$0xff] %vm161, %v2317
    // Predicated region
    $region78: #{tpu_custom_call.1} parent=1 // pred_check
      _
    $region79: #{tpu_custom_call.1} parent=1 // pred_check_branch
      %2323 = sbr.rel (0) target = $region81
    $region80: #{tpu_custom_call.1} parent=1 // pred_region
      %s2325 = ssub.s32 256, 256
      %2326 = vsyncadd [#allocation5], %s2325
      %s2327 = sshll.u32 [#allocation18], 4
      %s2328 = int_to_ptr.vmem [resolvable:$true] %s2327
      %2333 = dma.vmem_to_hbm [thread:$0]  %s2328, 256, %s10, [#allocation5], 128, 128, 8
    $region81: #{tpu_custom_call.1} parent=1 // pred_fallthru
      _
    // Predicated region
    $region82: #{tpu_custom_call.1} parent=1 // pred_check
      _
    $region83: #{tpu_custom_call.1} parent=1 // pred_check_branch
      %2335 = sbr.rel (0) target = $region85
    $region84: #{tpu_custom_call.1} parent=1 // pred_region
      %2336 = dma.done [#allocation5], 256
    $region85: #{tpu_custom_call.1} parent=1 // pred_fallthru
      _
    %2337 = vsyncpa [#allocation4], 1
    %2338 = vsyncpa [#allocation7], 1
    %2339 = vsyncpa [#allocation10], 1
    %2340 = vsyncpa [#allocation13], 1
    %2341 = vsyncpa [#allocation16], 1
    %2342 = vsyncpa [#allocation5], 1

</llo_original>
